<compile_context>
chip_gen: v7x
topology: tpu7x:2x2x1
jax: 0.10.0
libtpu: 0.0.40
codegen_flags: <defaults>
</compile_context>

<pallas_src>
import jax
import jax.numpy as jnp
from jax import lax
from jax.experimental import pallas as pl
from jax.experimental.pallas import tpu as pltpu

EPS = 1e-5


def _softmax_lanes(x):
    """Numerically-stable softmax along the last (lane) axis."""
    m = jnp.max(x, axis=-1, keepdims=True)
    e = jnp.exp(x - m)
    return e * pl.reciprocal(jnp.sum(e, axis=-1, keepdims=True), approx=True)


def _attention_kernel(x1_ref, x2_ref,
                      wc1_ref, bc1_ref, wc2_ref, bc2_ref,
                      ww1_ref, bw1_ref, ww2_ref, bw2_ref,
                      o1_ref, o2_ref):
    # x refs: (1, C, N); fused proj weights: (2*ic, C); biases: (rows, 1).
    x1 = x1_ref[0]                       # (C, N)
    x2 = x2_ref[0]                       # (C, N)
    ic = wc1_ref.shape[0] // 2

    # Fused 1x1-conv projections (BN folded): (2ic, C) @ (C, N) -> (2ic, N)
    proj1 = jnp.dot(wc1_ref[...], x1,
                    preferred_element_type=jnp.float32) + bc1_ref[...]
    proj2 = jnp.dot(wc2_ref[...], x2,
                    preferred_element_type=jnp.float32) + bc2_ref[...]

    t1 = proj1[:ic].astype(jnp.bfloat16)     # theta(x1): (ic, N)
    g1 = proj1[ic:].astype(jnp.bfloat16)     # g1(x1)   : (ic, N)
    p1 = proj2[:ic].astype(jnp.bfloat16)     # phi(x2)  : (ic, N)
    g2 = proj2[ic:].astype(jnp.bfloat16)     # g2(x2)   : (ic, N)

    # Time energies (ic, ic): et1[i, j] = sum_n t1[i, n] * p1[j, n]; et2 = et1^T
    et1 = lax.dot_general(t1, p1, (((1,), (1,)), ((), ())),
                          preferred_element_type=jnp.float32)
    et2 = lax.dot_general(p1, t1, (((1,), (1,)), ((), ())),
                          preferred_element_type=jnp.float32)

    # Spatial energy es1[n, m] = sum_i t1[i, n] * p1[i, m] and its transpose,
    # both via cheap ic-contraction MXU dots so both spatial softmaxes reduce
    # along lanes (no sublane/cross-vreg softmax).
    es1 = lax.dot_general(t1, p1, (((0,), (0,)), ((), ())),
                          preferred_element_type=jnp.float32)    # (N, N)
    es1t = lax.dot_general(p1, t1, (((0,), (0,)), ((), ())),
                           preferred_element_type=jnp.float32)   # es1^T

    et1s = _softmax_lanes(et1).astype(jnp.bfloat16)    # energy_time_1s
    et2s = _softmax_lanes(et2).astype(jnp.bfloat16)    # energy_time_2s
    # energy_space_2s = softmax(es1, dim=-2); we hold its transpose:
    es2st = _softmax_lanes(es1t).astype(jnp.bfloat16)  # es2st[m, n] = es2s[n, m]
    # energy_space_1s = (row-softmax of es1)^T; hold the un-transposed form:
    esrs = _softmax_lanes(es1).astype(jnp.bfloat16)

    # y1 = (et2s @ g_x11) @ es2s          (channels-first: (ic, N))
    y1_mid = jnp.dot(et2s, g1, preferred_element_type=jnp.float32)
    y1 = lax.dot_general(y1_mid.astype(jnp.bfloat16), es2st,
                         (((1,), (1,)), ((), ())),
                         preferred_element_type=jnp.float32)      # (ic, N)

    # y2 = (et1s @ g_x21) @ esrs^T        (contract esrs dim 1 => no transpose)
    y2_mid = jnp.dot(et1s, g2, preferred_element_type=jnp.float32)
    y2 = lax.dot_general(y2_mid.astype(jnp.bfloat16), esrs,
                         (((1,), (1,)), ((), ())),
                         preferred_element_type=jnp.float32)      # (ic, N)

    # W1(y1), W2(y2): (C, ic) @ (ic, N) -> (C, N); residual add; lane-dense store.
    d1 = jnp.dot(ww1_ref[...], y1, preferred_element_type=jnp.float32) + bw1_ref[...]
    d2 = jnp.dot(ww2_ref[...], y2, preferred_element_type=jnp.float32) + bw2_ref[...]

    o1_ref[0] = (x1 + d1).astype(o1_ref.dtype)
    o2_ref[0] = (x2 + d2).astype(o2_ref.dtype)


def spatiotemporal_attention(x1, x2, folded):
    """x1, x2: (B, C, H, W) float32 (NCHW).  Returns (out1, out2) in NCHW."""
    B, C, H, W = x1.shape
    N = H * W
    x1f = x1.reshape(B, C, N)            # channels-first: free reshape, no transpose
    x2f = x2.reshape(B, C, N)

    # Fuse theta/g1 (acting on x1) and phi/g2 (acting on x2) projections.
    wc1 = jnp.concatenate([folded['wth'], folded['wg1']], axis=0)    # (2ic, C)
    bc1 = jnp.concatenate([folded['bth'], folded['bg1']], axis=0)    # (2ic, 1)
    wc2 = jnp.concatenate([folded['wph'], folded['wg2']], axis=0)
    bc2 = jnp.concatenate([folded['bph'], folded['bg2']], axis=0)

    weights = [wc1, bc1, wc2, bc2,
               folded['ww1'], folded['bw1'], folded['ww2'], folded['bw2']]
    w_specs = [pl.BlockSpec(w.shape, lambda b: (0, 0)) for w in weights]

    x_spec = pl.BlockSpec((1, C, N), lambda b: (b, 0, 0))
    out_shape = (jax.ShapeDtypeStruct((B, C, N), x1.dtype),
                 jax.ShapeDtypeStruct((B, C, N), x2.dtype))

    # VMEM budget: double-buffered x/out tiles + weights + N^2 softmax
    # temporaries (f32 + bf16 copies) with headroom.
    vmem_limit = max(12 * N * N * 4 + 64 * C * N * 4 + (2 << 20), 16 << 20)

    o1, o2 = pl.pallas_call(
        _attention_kernel,
        out_shape=out_shape,
        grid_spec=pltpu.PrefetchScalarGridSpec(
            num_scalar_prefetch=0,
            grid=(B,),
            in_specs=[x_spec, x_spec] + w_specs,
            out_specs=[x_spec, x_spec],
        ),
        compiler_params=pltpu.CompilerParams(
            dimension_semantics=("parallel",),
            vmem_limit_bytes=int(vmem_limit)),
    )(x1f, x2f, *weights)

    return o1.reshape(B, C, H, W), o2.reshape(B, C, H, W)


# ----------------------------- parameter setup ------------------------------

def make_raw_params(key, C, ic):
    ks = iter(jax.random.split(key, 64))

    def bn_params(c):
        gamma = jax.random.uniform(next(ks), (c,), minval=0.5, maxval=1.5)
        beta = 0.1 * jax.random.normal(next(ks), (c,))
        mean = 0.1 * jax.random.normal(next(ks), (c,))
        var = jax.random.uniform(next(ks), (c,), minval=0.5, maxval=1.5)
        return (gamma, beta, mean, var)

    def conv_params(cout, cin):
        w = 0.1 * jax.random.normal(next(ks), (cout, cin))
        b = 0.1 * jax.random.normal(next(ks), (cout,))
        return w, b

    raw = {}
    for name in ('g1', 'g2', 'theta', 'phi'):      # BN(C) then Conv C->ic
        bnp = bn_params(C)
        w, b = conv_params(ic, C)
        raw[name] = {'bn': bnp, 'w': w, 'b': b}
    for name in ('W1', 'W2'):                      # Conv ic->C then BN(C)
        w, b = conv_params(C, ic)
        bnp = bn_params(C)
        raw[name] = {'bn': bnp, 'w': w, 'b': b}
    return raw


def fold_params(raw):
    """Fold eval-mode BatchNorm into the 1x1 conv weights/biases.

    Biases are returned as column vectors (Cout, 1) for the channels-first
    (C, N) kernel layout.
    """
    def fold_bn_then_conv(d):
        gamma, beta, mean, var = d['bn']
        scale = gamma / jnp.sqrt(var + EPS)            # (Cin,)
        shift = beta - mean * scale                    # (Cin,)
        w_e = d['w'] * scale[None, :]                  # (Cout, Cin)
        b_e = d['w'] @ shift + d['b']                  # (Cout,)
        return w_e, b_e[:, None]

    def fold_conv_then_bn(d):
        gamma, beta, mean, var = d['bn']
        scale = gamma / jnp.sqrt(var + EPS)            # (Cout,)
        w_e = d['w'] * scale[:, None]                  # (Cout, Cin)
        b_e = (d['b'] - mean) * scale + beta           # (Cout,)
        return w_e, b_e[:, None]

    folded = {}
    folded['wg1'], folded['bg1'] = fold_bn_then_conv(raw['g1'])
    folded['wg2'], folded['bg2'] = fold_bn_then_conv(raw['g2'])
    folded['wth'], folded['bth'] = fold_bn_then_conv(raw['theta'])
    folded['wph'], folded['bph'] = fold_bn_then_conv(raw['phi'])
    folded['ww1'], folded['bw1'] = fold_conv_then_bn(raw['W1'])
    folded['ww2'], folded['bw2'] = fold_conv_then_bn(raw['W2'])
    return folded


# ------------------------- pure-JAX (PyTorch-style) reference ----------------

def reference(x1, x2, raw, ic):
    def bn(x, p):
        g, b, m, v = p
        inv = (g / jnp.sqrt(v + EPS))[None, :, None, None]
        return (x - m[None, :, None, None]) * inv + b[None, :, None, None]

    def conv(x, w, b):
        return jnp.einsum('bchw,oc->bohw', x, w) + b[None, :, None, None]

    B, C, H, W = x1.shape
    g_x11 = conv(bn(x1, raw['g1']['bn']), raw['g1']['w'], raw['g1']['b']).reshape(B, ic, -1)
    g_x21 = conv(bn(x2, raw['g2']['bn']), raw['g2']['w'], raw['g2']['b']).reshape(B, ic, -1)
    theta_x1 = conv(bn(x1, raw['theta']['bn']), raw['theta']['w'], raw['theta']['b']).reshape(B, ic, -1)
    phi_x1 = conv(bn(x2, raw['phi']['bn']), raw['phi']['w'], raw['phi']['b']).reshape(B, ic, -1)
    theta_x2 = jnp.transpose(theta_x1, (0, 2, 1))
    phi_x2 = jnp.transpose(phi_x1, (0, 2, 1))

    et1 = jnp.matmul(theta_x1, phi_x2)
    et2 = jnp.transpose(et1, (0, 2, 1))
    es1 = jnp.matmul(theta_x2, phi_x1)
    es2 = jnp.transpose(es1, (0, 2, 1))

    et1s = jax.nn.softmax(et1, axis=-1)
    et2s = jax.nn.softmax(et2, axis=-1)
    es2s = jax.nn.softmax(es1, axis=-2)
    es1s = jax.nn.softmax(es2, axis=-2)

    y1 = jnp.matmul(jnp.matmul(et2s, g_x11), es2s).reshape(B, ic, H, W)
    y2 = jnp.matmul(jnp.matmul(et1s, g_x21), es1s).reshape(B, ic, H, W)

    def w_branch(y, d):
        return bn(conv(y, d['w'], d['b']), d['bn'])

    return x1 + w_branch(y1, raw['W1']), x2 + w_branch(y2, raw['W2'])


# ----------------------------------- main ------------------------------------

if __name__ == "__main__":
    B, C, H, W = 2, 8, 16, 16
    IC = C // 2

    key = jax.random.PRNGKey(0)
    k1, k2, kp = jax.random.split(key, 3)
    x1 = jax.random.normal(k1, (B, C, H, W), dtype=jnp.float32)
    x2 = jax.random.normal(k2, (B, C, H, W), dtype=jnp.float32)

    raw = make_raw_params(kp, C, IC)
    folded = fold_params(raw)

    out1, out2 = spatiotemporal_attention(x1, x2, folded)
    out1 = jax.block_until_ready(out1)
    out2 = jax.block_until_ready(out2)

    ref1, ref2 = reference(x1, x2, raw, IC)
    assert jnp.allclose(out1, ref1, atol=5e-2, rtol=5e-2), "out1 mismatch"
    assert jnp.allclose(out2, ref2, atol=5e-2, rtol=5e-2), "out2 mismatch"

    print("KERNEL_OK")
</pallas_src>

<mosaic_0001>
module attributes {stable_mosaic.version = 11 : i64} {
  func.func @_attention_kernel(%arg0: i32, %arg1: memref<1x8x256xf32, #tpu.memory_space<vmem>>, %arg2: memref<1x8x256xf32, #tpu.memory_space<vmem>>, %arg3: memref<8x8xf32, #tpu.memory_space<vmem>>, %arg4: memref<8x1xf32, #tpu.memory_space<vmem>>, %arg5: memref<8x8xf32, #tpu.memory_space<vmem>>, %arg6: memref<8x1xf32, #tpu.memory_space<vmem>>, %arg7: memref<8x4xf32, #tpu.memory_space<vmem>>, %arg8: memref<8x1xf32, #tpu.memory_space<vmem>>, %arg9: memref<8x4xf32, #tpu.memory_space<vmem>>, %arg10: memref<8x1xf32, #tpu.memory_space<vmem>>, %arg11: memref<1x8x256xf32, #tpu.memory_space<vmem>>, %arg12: memref<1x8x256xf32, #tpu.memory_space<vmem>>) attributes {dimension_semantics = [#tpu.dimension_semantics<parallel>], iteration_bounds = array<i64: 2>, scalar_prefetch = 0 : i64, scratch_operands = 0 : i64, tpu.core_type = #tpu.core_type<tc>, window_params = [{transform_indices = @transform_0, window_bounds = array<i64: 1, 8, 256>}, {transform_indices = @transform_1, window_bounds = array<i64: 1, 8, 256>}, {pipeline_mode = #tpu.pipeline_mode<synchronous>, transform_indices = @transform_2, window_bounds = array<i64: 8, 8>}, {pipeline_mode = #tpu.pipeline_mode<synchronous>, transform_indices = @transform_3, window_bounds = array<i64: 8, 1>}, {pipeline_mode = #tpu.pipeline_mode<synchronous>, transform_indices = @transform_4, window_bounds = array<i64: 8, 8>}, {pipeline_mode = #tpu.pipeline_mode<synchronous>, transform_indices = @transform_5, window_bounds = array<i64: 8, 1>}, {pipeline_mode = #tpu.pipeline_mode<synchronous>, transform_indices = @transform_6, window_bounds = array<i64: 8, 4>}, {pipeline_mode = #tpu.pipeline_mode<synchronous>, transform_indices = @transform_7, window_bounds = array<i64: 8, 1>}, {pipeline_mode = #tpu.pipeline_mode<synchronous>, transform_indices = @transform_8, window_bounds = array<i64: 8, 4>}, {pipeline_mode = #tpu.pipeline_mode<synchronous>, transform_indices = @transform_9, window_bounds = array<i64: 8, 1>}, {transform_indices = @transform_10, window_bounds = array<i64: 1, 8, 256>}, {transform_indices = @transform_11, window_bounds = array<i64: 1, 8, 256>}]} {
    %c0 = arith.constant 0 : index
    %c0_0 = arith.constant 0 : index
    %c0_1 = arith.constant 0 : index
    %0 = vector.load %arg1[%c0, %c0_0, %c0_1] : memref<1x8x256xf32, #tpu.memory_space<vmem>>, vector<1x8x256xf32>
    %1 = vector.shape_cast %0 : vector<1x8x256xf32> to vector<8x256xf32>
    %c0_2 = arith.constant 0 : index
    %c0_3 = arith.constant 0 : index
    %c0_4 = arith.constant 0 : index
    %2 = vector.load %arg2[%c0_2, %c0_3, %c0_4] : memref<1x8x256xf32, #tpu.memory_space<vmem>>, vector<1x8x256xf32>
    %3 = vector.shape_cast %2 : vector<1x8x256xf32> to vector<8x256xf32>
    %c0_5 = arith.constant 0 : index
    %c0_6 = arith.constant 0 : index
    %4 = vector.load %arg3[%c0_5, %c0_6] : memref<8x8xf32, #tpu.memory_space<vmem>>, vector<8x8xf32>
    %cst = arith.constant dense<0.000000e+00> : vector<8x256xf32>
    %5 = tpu.matmul %4, %1, %cst {dimension_numbers = #tpu.dot_dimension_numbers<[1], [0], [0], [1], [0, 0, 1, 1], [], []>} : vector<8x8xf32>, vector<8x256xf32>, vector<8x256xf32> -> vector<8x256xf32>
    %c0_7 = arith.constant 0 : index
    %c0_8 = arith.constant 0 : index
    %6 = vector.load %arg4[%c0_7, %c0_8] : memref<8x1xf32, #tpu.memory_space<vmem>>, vector<8x1xf32>
    %7 = vector.broadcast %6 : vector<8x1xf32> to vector<8x256xf32>
    %8 = arith.addf %5, %7 : vector<8x256xf32>
    %c0_9 = arith.constant 0 : index
    %c0_10 = arith.constant 0 : index
    %9 = vector.load %arg5[%c0_9, %c0_10] : memref<8x8xf32, #tpu.memory_space<vmem>>, vector<8x8xf32>
    %cst_11 = arith.constant dense<0.000000e+00> : vector<8x256xf32>
    %10 = tpu.matmul %9, %3, %cst_11 {dimension_numbers = #tpu.dot_dimension_numbers<[1], [0], [0], [1], [0, 0, 1, 1], [], []>} : vector<8x8xf32>, vector<8x256xf32>, vector<8x256xf32> -> vector<8x256xf32>
    %c0_12 = arith.constant 0 : index
    %c0_13 = arith.constant 0 : index
    %11 = vector.load %arg6[%c0_12, %c0_13] : memref<8x1xf32, #tpu.memory_space<vmem>>, vector<8x1xf32>
    %12 = vector.broadcast %11 : vector<8x1xf32> to vector<8x256xf32>
    %13 = arith.addf %10, %12 : vector<8x256xf32>
    %14 = vector.extract_strided_slice %8 {offsets = [0, 0], sizes = [4, 256], strides = [1, 1]} : vector<8x256xf32> to vector<4x256xf32>
    %15 = arith.truncf %14 : vector<4x256xf32> to vector<4x256xbf16>
    %16 = vector.extract_strided_slice %8 {offsets = [4, 0], sizes = [4, 256], strides = [1, 1]} : vector<8x256xf32> to vector<4x256xf32>
    %17 = arith.truncf %16 : vector<4x256xf32> to vector<4x256xbf16>
    %18 = vector.extract_strided_slice %13 {offsets = [0, 0], sizes = [4, 256], strides = [1, 1]} : vector<8x256xf32> to vector<4x256xf32>
    %19 = arith.truncf %18 : vector<4x256xf32> to vector<4x256xbf16>
    %20 = vector.extract_strided_slice %13 {offsets = [4, 0], sizes = [4, 256], strides = [1, 1]} : vector<8x256xf32> to vector<4x256xf32>
    %21 = arith.truncf %20 : vector<4x256xf32> to vector<4x256xbf16>
    %cst_14 = arith.constant dense<0.000000e+00> : vector<4x4xf32>
    %22 = tpu.matmul %15, %19, %cst_14 {dimension_numbers = #tpu.dot_dimension_numbers<[1], [1], [0], [0], [0, 0, 1, 0], [], []>} : vector<4x256xbf16>, vector<4x256xbf16>, vector<4x4xf32> -> vector<4x4xf32>
    %cst_15 = arith.constant dense<0.000000e+00> : vector<4x4xf32>
    %23 = tpu.matmul %19, %15, %cst_15 {dimension_numbers = #tpu.dot_dimension_numbers<[1], [1], [0], [0], [0, 0, 1, 0], [], []>} : vector<4x256xbf16>, vector<4x256xbf16>, vector<4x4xf32> -> vector<4x4xf32>
    %cst_16 = arith.constant dense<0.000000e+00> : vector<256x256xf32>
    %24 = tpu.matmul %15, %19, %cst_16 {dimension_numbers = #tpu.dot_dimension_numbers<[0], [0], [1], [1], [0, 1, 1, 1], [], []>} : vector<4x256xbf16>, vector<4x256xbf16>, vector<256x256xf32> -> vector<256x256xf32>
    %cst_17 = arith.constant dense<0.000000e+00> : vector<256x256xf32>
    %25 = tpu.matmul %19, %15, %cst_17 {dimension_numbers = #tpu.dot_dimension_numbers<[0], [0], [1], [1], [0, 1, 1, 1], [], []>} : vector<4x256xbf16>, vector<4x256xbf16>, vector<256x256xf32> -> vector<256x256xf32>
    %cst_18 = arith.constant dense<0xFF800000> : vector<4xf32>
    %26 = vector.multi_reduction <maximumf>, %22, %cst_18 [1] : vector<4x4xf32> to vector<4xf32>
    %27 = vector.shape_cast %26 : vector<4xf32> to vector<4x1xf32>
    %28 = vector.broadcast %27 : vector<4x1xf32> to vector<4x4xf32>
    %29 = arith.subf %22, %28 : vector<4x4xf32>
    %30 = math.exp %29 : vector<4x4xf32>
    %cst_19 = arith.constant dense<0.000000e+00> : vector<4xf32>
    %31 = vector.multi_reduction <add>, %30, %cst_19 [1] : vector<4x4xf32> to vector<4xf32>
    %32 = vector.shape_cast %31 : vector<4xf32> to vector<4x1xf32>
    %33 = tpu.reciprocal %32 {approx = true} : vector<4x1xf32> -> vector<4x1xf32>
    %34 = vector.broadcast %33 : vector<4x1xf32> to vector<4x4xf32>
    %35 = arith.mulf %30, %34 : vector<4x4xf32>
    %36 = arith.truncf %35 : vector<4x4xf32> to vector<4x4xbf16>
    %cst_20 = arith.constant dense<0xFF800000> : vector<4xf32>
    %37 = vector.multi_reduction <maximumf>, %23, %cst_20 [1] : vector<4x4xf32> to vector<4xf32>
    %38 = vector.shape_cast %37 : vector<4xf32> to vector<4x1xf32>
    %39 = vector.broadcast %38 : vector<4x1xf32> to vector<4x4xf32>
    %40 = arith.subf %23, %39 : vector<4x4xf32>
    %41 = math.exp %40 : vector<4x4xf32>
    %cst_21 = arith.constant dense<0.000000e+00> : vector<4xf32>
    %42 = vector.multi_reduction <add>, %41, %cst_21 [1] : vector<4x4xf32> to vector<4xf32>
    %43 = vector.shape_cast %42 : vector<4xf32> to vector<4x1xf32>
    %44 = tpu.reciprocal %43 {approx = true} : vector<4x1xf32> -> vector<4x1xf32>
    %45 = vector.broadcast %44 : vector<4x1xf32> to vector<4x4xf32>
    %46 = arith.mulf %41, %45 : vector<4x4xf32>
    %47 = arith.truncf %46 : vector<4x4xf32> to vector<4x4xbf16>
    %cst_22 = arith.constant dense<0xFF800000> : vector<256xf32>
    %48 = vector.multi_reduction <maximumf>, %25, %cst_22 [1] : vector<256x256xf32> to vector<256xf32>
    %49 = vector.shape_cast %48 : vector<256xf32> to vector<256x1xf32>
    %50 = vector.broadcast %49 : vector<256x1xf32> to vector<256x256xf32>
    %51 = arith.subf %25, %50 : vector<256x256xf32>
    %52 = math.exp %51 : vector<256x256xf32>
    %cst_23 = arith.constant dense<0.000000e+00> : vector<256xf32>
    %53 = vector.multi_reduction <add>, %52, %cst_23 [1] : vector<256x256xf32> to vector<256xf32>
    %54 = vector.shape_cast %53 : vector<256xf32> to vector<256x1xf32>
    %55 = tpu.reciprocal %54 {approx = true} : vector<256x1xf32> -> vector<256x1xf32>
    %56 = vector.broadcast %55 : vector<256x1xf32> to vector<256x256xf32>
    %57 = arith.mulf %52, %56 : vector<256x256xf32>
    %58 = arith.truncf %57 : vector<256x256xf32> to vector<256x256xbf16>
    %cst_24 = arith.constant dense<0xFF800000> : vector<256xf32>
    %59 = vector.multi_reduction <maximumf>, %24, %cst_24 [1] : vector<256x256xf32> to vector<256xf32>
    %60 = vector.shape_cast %59 : vector<256xf32> to vector<256x1xf32>
    %61 = vector.broadcast %60 : vector<256x1xf32> to vector<256x256xf32>
    %62 = arith.subf %24, %61 : vector<256x256xf32>
    %63 = math.exp %62 : vector<256x256xf32>
    %cst_25 = arith.constant dense<0.000000e+00> : vector<256xf32>
    %64 = vector.multi_reduction <add>, %63, %cst_25 [1] : vector<256x256xf32> to vector<256xf32>
    %65 = vector.shape_cast %64 : vector<256xf32> to vector<256x1xf32>
    %66 = tpu.reciprocal %65 {approx = true} : vector<256x1xf32> -> vector<256x1xf32>
    %67 = vector.broadcast %66 : vector<256x1xf32> to vector<256x256xf32>
    %68 = arith.mulf %63, %67 : vector<256x256xf32>
    %69 = arith.truncf %68 : vector<256x256xf32> to vector<256x256xbf16>
    %cst_26 = arith.constant dense<0.000000e+00> : vector<4x256xf32>
    %70 = tpu.matmul %47, %17, %cst_26 {dimension_numbers = #tpu.dot_dimension_numbers<[1], [0], [0], [1], [0, 0, 1, 1], [], []>} : vector<4x4xbf16>, vector<4x256xbf16>, vector<4x256xf32> -> vector<4x256xf32>
    %71 = arith.truncf %70 : vector<4x256xf32> to vector<4x256xbf16>
    %cst_27 = arith.constant dense<0.000000e+00> : vector<4x256xf32>
    %72 = tpu.matmul %71, %58, %cst_27 {dimension_numbers = #tpu.dot_dimension_numbers<[1], [1], [0], [0], [0, 0, 1, 0], [], []>} : vector<4x256xbf16>, vector<256x256xbf16>, vector<4x256xf32> -> vector<4x256xf32>
    %cst_28 = arith.constant dense<0.000000e+00> : vector<4x256xf32>
    %73 = tpu.matmul %36, %21, %cst_28 {dimension_numbers = #tpu.dot_dimension_numbers<[1], [0], [0], [1], [0, 0, 1, 1], [], []>} : vector<4x4xbf16>, vector<4x256xbf16>, vector<4x256xf32> -> vector<4x256xf32>
    %74 = arith.truncf %73 : vector<4x256xf32> to vector<4x256xbf16>
    %cst_29 = arith.constant dense<0.000000e+00> : vector<4x256xf32>
    %75 = tpu.matmul %74, %69, %cst_29 {dimension_numbers = #tpu.dot_dimension_numbers<[1], [1], [0], [0], [0, 0, 1, 0], [], []>} : vector<4x256xbf16>, vector<256x256xbf16>, vector<4x256xf32> -> vector<4x256xf32>
    %c0_30 = arith.constant 0 : index
    %c0_31 = arith.constant 0 : index
    %76 = vector.load %arg7[%c0_30, %c0_31] : memref<8x4xf32, #tpu.memory_space<vmem>>, vector<8x4xf32>
    %cst_32 = arith.constant dense<0.000000e+00> : vector<8x256xf32>
    %77 = tpu.matmul %76, %72, %cst_32 {dimension_numbers = #tpu.dot_dimension_numbers<[1], [0], [0], [1], [0, 0, 1, 1], [], []>} : vector<8x4xf32>, vector<4x256xf32>, vector<8x256xf32> -> vector<8x256xf32>
    %c0_33 = arith.constant 0 : index
    %c0_34 = arith.constant 0 : index
    %78 = vector.load %arg8[%c0_33, %c0_34] : memref<8x1xf32, #tpu.memory_space<vmem>>, vector<8x1xf32>
    %79 = vector.broadcast %78 : vector<8x1xf32> to vector<8x256xf32>
    %80 = arith.addf %77, %79 : vector<8x256xf32>
    %c0_35 = arith.constant 0 : index
    %c0_36 = arith.constant 0 : index
    %81 = vector.load %arg9[%c0_35, %c0_36] : memref<8x4xf32, #tpu.memory_space<vmem>>, vector<8x4xf32>
    %cst_37 = arith.constant dense<0.000000e+00> : vector<8x256xf32>
    %82 = tpu.matmul %81, %75, %cst_37 {dimension_numbers = #tpu.dot_dimension_numbers<[1], [0], [0], [1], [0, 0, 1, 1], [], []>} : vector<8x4xf32>, vector<4x256xf32>, vector<8x256xf32> -> vector<8x256xf32>
    %c0_38 = arith.constant 0 : index
    %c0_39 = arith.constant 0 : index
    %83 = vector.load %arg10[%c0_38, %c0_39] : memref<8x1xf32, #tpu.memory_space<vmem>>, vector<8x1xf32>
    %84 = vector.broadcast %83 : vector<8x1xf32> to vector<8x256xf32>
    %85 = arith.addf %82, %84 : vector<8x256xf32>
    %86 = arith.addf %1, %80 : vector<8x256xf32>
    %c0_40 = arith.constant 0 : index
    %c0_41 = arith.constant 0 : index
    %c0_42 = arith.constant 0 : index
    %87 = vector.load %arg11[%c0_40, %c0_41, %c0_42] : memref<1x8x256xf32, #tpu.memory_space<vmem>>, vector<1x8x256xf32>
    %88 = vector.shape_cast %87 : vector<1x8x256xf32> to vector<8x256xf32>
    %89 = vector.shape_cast %86 : vector<8x256xf32> to vector<1x8x256xf32>
    tpu.vector_store %arg11[%c0_40, %c0_41, %c0_42], %89 {strides = array<i32>} : memref<1x8x256xf32, #tpu.memory_space<vmem>>, vector<1x8x256xf32>,
    %90 = arith.addf %3, %85 : vector<8x256xf32>
    %c0_43 = arith.constant 0 : index
    %c0_44 = arith.constant 0 : index
    %c0_45 = arith.constant 0 : index
    %91 = vector.load %arg12[%c0_43, %c0_44, %c0_45] : memref<1x8x256xf32, #tpu.memory_space<vmem>>, vector<1x8x256xf32>
    %92 = vector.shape_cast %91 : vector<1x8x256xf32> to vector<8x256xf32>
    %93 = vector.shape_cast %90 : vector<8x256xf32> to vector<1x8x256xf32>
    tpu.vector_store %arg12[%c0_43, %c0_44, %c0_45], %93 {strides = array<i32>} : memref<1x8x256xf32, #tpu.memory_space<vmem>>, vector<1x8x256xf32>,
    return
  }
  func.func @transform_0(%arg0: i32) -> (i32, i32, i32) {
    %c0_i32 = arith.constant 0 : i32
    %c0_i32_0 = arith.constant 0 : i32
    %c0_i32_1 = arith.constant 0 : i32
    return %arg0, %c0_i32, %c0_i32_0 : i32, i32, i32
  }
  func.func @transform_1(%arg0: i32) -> (i32, i32, i32) {
    %c0_i32 = arith.constant 0 : i32
    %c0_i32_0 = arith.constant 0 : i32
    %c0_i32_1 = arith.constant 0 : i32
    return %arg0, %c0_i32, %c0_i32_0 : i32, i32, i32
  }
  func.func @transform_2(%arg0: i32) -> (i32, i32) {
    %c0_i32 = arith.constant 0 : i32
    %c0_i32_0 = arith.constant 0 : i32
    %c0_i32_1 = arith.constant 0 : i32
    return %c0_i32, %c0_i32_0 : i32, i32
  }
  func.func @transform_3(%arg0: i32) -> (i32, i32) {
    %c0_i32 = arith.constant 0 : i32
    %c0_i32_0 = arith.constant 0 : i32
    %c0_i32_1 = arith.constant 0 : i32
    return %c0_i32, %c0_i32_0 : i32, i32
  }
  func.func @transform_4(%arg0: i32) -> (i32, i32) {
    %c0_i32 = arith.constant 0 : i32
    %c0_i32_0 = arith.constant 0 : i32
    %c0_i32_1 = arith.constant 0 : i32
    return %c0_i32, %c0_i32_0 : i32, i32
  }
  func.func @transform_5(%arg0: i32) -> (i32, i32) {
    %c0_i32 = arith.constant 0 : i32
    %c0_i32_0 = arith.constant 0 : i32
    %c0_i32_1 = arith.constant 0 : i32
    return %c0_i32, %c0_i32_0 : i32, i32
  }
  func.func @transform_6(%arg0: i32) -> (i32, i32) {
    %c0_i32 = arith.constant 0 : i32
    %c0_i32_0 = arith.constant 0 : i32
    %c0_i32_1 = arith.constant 0 : i32
    return %c0_i32, %c0_i32_0 : i32, i32
  }
  func.func @transform_7(%arg0: i32) -> (i32, i32) {
    %c0_i32 = arith.constant 0 : i32
    %c0_i32_0 = arith.constant 0 : i32
    %c0_i32_1 = arith.constant 0 : i32
    return %c0_i32, %c0_i32_0 : i32, i32
  }
  func.func @transform_8(%arg0: i32) -> (i32, i32) {
    %c0_i32 = arith.constant 0 : i32
    %c0_i32_0 = arith.constant 0 : i32
    %c0_i32_1 = arith.constant 0 : i32
    return %c0_i32, %c0_i32_0 : i32, i32
  }
  func.func @transform_9(%arg0: i32) -> (i32, i32) {
    %c0_i32 = arith.constant 0 : i32
    %c0_i32_0 = arith.constant 0 : i32
    %c0_i32_1 = arith.constant 0 : i32
    return %c0_i32, %c0_i32_0 : i32, i32
  }
  func.func @transform_10(%arg0: i32) -> (i32, i32, i32) {
    %c0_i32 = arith.constant 0 : i32
    %c0_i32_0 = arith.constant 0 : i32
    %c0_i32_1 = arith.constant 0 : i32
    return %arg0, %c0_i32, %c0_i32_0 : i32, i32, i32
  }
  func.func @transform_11(%arg0: i32) -> (i32, i32, i32) {
    %c0_i32 = arith.constant 0 : i32
    %c0_i32_0 = arith.constant 0 : i32
    %c0_i32_1 = arith.constant 0 : i32
    return %arg0, %c0_i32, %c0_i32_0 : i32, i32, i32
  }
}

</mosaic_0001>

<llo_original>
// kernel: tpu_custom_call.1
$region0: #{tpu_custom_call.1}
  #allocation0 [shape = 'u32[]', space=smem, size = 0x4, offset = 0x4, fixed_abs, tag = 'smem constant byte address 0x4 - core index']
  #allocation1 [shape = 'u32[144,128]{1,0:T(1,128)}', space=vmem, size = 0x12000, scoped, tag = 'internal scratch']
  %s0 = inlined_call_operand.vmem [shape: f32[2,8,256], index: 0, kind: input, shape index: {}]
  %s1 = inlined_call_operand.hbm [shape: f32[2,8,256], index: 1, kind: input, shape index: {}]
  %s2 = inlined_call_operand.vmem [shape: f32[8,8], index: 2, kind: input, shape index: {}]
  %s3 = inlined_call_operand.vmem [shape: f32[8,1], index: 3, kind: input, shape index: {}]
  %s4 = inlined_call_operand.vmem [shape: f32[8,8], index: 4, kind: input, shape index: {}]
  %s5 = inlined_call_operand.vmem [shape: f32[8,1], index: 5, kind: input, shape index: {}]
  %s6 = inlined_call_operand.vmem [shape: f32[8,4], index: 6, kind: input, shape index: {}]
  %s7 = inlined_call_operand.vmem [shape: f32[8,1], index: 7, kind: input, shape index: {}]
  %s8 = inlined_call_operand.vmem [shape: f32[8,4], index: 8, kind: input, shape index: {}]
  %s9 = inlined_call_operand.vmem [shape: f32[8,1], index: 9, kind: input, shape index: {}]
  %s10 = inlined_call_operand.hbm [shape: f32[2,8,256], index: 10, kind: output, shape index: {0}]
  %s11 = inlined_call_operand.hbm [shape: f32[2,8,256], index: 11, kind: output, shape index: {1}]
  %12 = xla_tuple %s10, %s11
  %s13 = sld [smem:[#allocation0]]
  $region85: #{tpu_custom_call.1} parent=0
    _
  %s15 = ssub.s32 1, %s13
  %s16 = scalar_select 0, %s15, %s13
  $region1: #{tpu_custom_call.1} parent=0
    #allocation2 [shape = 'u8[16384]{0}', space=vmem, size = 0x4000, scoped, tag = 'input window, operand 1']
    #allocation3 [shape = 's32[2]{0}', space=sflag, size = 0x8, scoped, tag = 'scoped memory for tpu_custom_call.1']
    #allocation4 [shape = 's32[2]{0}', space=sflag, size = 0x8, scoped, tag = 'scoped memory for tpu_custom_call.1']
    #allocation5 [shape = 'u8[16384]{0}', space=vmem, size = 0x4000, scoped, tag = 'output window, operand 0']
    #allocation6 [shape = 'u8[16384]{0}', space=vmem, size = 0x4000, scoped, tag = 'output window, operand 1']
    #allocation7 [shape = 's32[2]{0}', space=sflag, size = 0x8, scoped, tag = 'scoped memory for tpu_custom_call.1']
    %17 = vsyncpa [#allocation3], 0
    %s18 = scalar_lea.sflag [#allocation3], 1
    %19 = vsyncpa %s18, 0
    %20 = vsyncpa [#allocation4], 0
    %s21 = scalar_lea.sflag [#allocation4], 1
    %22 = vsyncpa %s21, 0
    %23 = vsyncpa [#allocation7], 0
    %s24 = scalar_lea.sflag [#allocation7], 1
    %25 = vsyncpa %s24, 0
    loop: start=0, step=1, limit=4
    $region2: #{tpu_custom_call.1} parent=1 // loop_pre_header
      _
    $region3: #{tpu_custom_call.1} parent=1 // loop_header
      %s27 = sphi 0, %s31
      %p28 = scmp.ge.s32.totalorder %s27, 4
      %s37 = sphi 0, %s39
      %s40 = sphi 0, %s37
      %s41 = sphi 0, %s40
      %s57 = sphi 0, %s41
      %s63 = sphi 0, %s65
      %s66 = sphi 0, %s63
      %s67 = sphi 0, %s66
      %s83 = sphi 0, %s67
      %s87 = sphi 0, %s87
      %s89 = sphi 0, %s87
      %s90 = sphi 0, %s89
      %s104 = sphi 0, %s90
      %s108 = sphi 0, %s108
      %s110 = sphi 0, %s108
      %s111 = sphi 0, %s110
      %s125 = sphi 0, %s111
      %s129 = sphi 0, %s129
      %s131 = sphi 0, %s129
      %s132 = sphi 0, %s131
      %s146 = sphi 0, %s132
      %s150 = sphi 0, %s150
      %s152 = sphi 0, %s150
      %s153 = sphi 0, %s152
      %s167 = sphi 0, %s153
      %s171 = sphi 0, %s171
      %s173 = sphi 0, %s171
      %s174 = sphi 0, %s173
      %s188 = sphi 0, %s174
      %s192 = sphi 0, %s192
      %s194 = sphi 0, %s192
      %s195 = sphi 0, %s194
      %s209 = sphi 0, %s195
      %s213 = sphi 0, %s213
      %s215 = sphi 0, %s213
      %s216 = sphi 0, %s215
      %s230 = sphi 0, %s216
      %s234 = sphi 0, %s234
      %s236 = sphi 0, %s234
      %s237 = sphi 0, %s236
      %s251 = sphi 0, %s237
      %s257 = sphi 0, %s259
      %s260 = sphi 0, %s257
      %s261 = sphi 0, %s260
      %s277 = sphi 0, %s261
      %s283 = sphi 0, %s285
      %s286 = sphi 0, %s283
      %s287 = sphi 0, %s286
      %s303 = sphi 0, %s287
    $region4: #{tpu_custom_call.1} parent=1 // loop_header_branch
      %30 = sbr.rel (%p28) target = $region8
    $region5: #{tpu_custom_call.1} parent=1 // loop_body
      %s32 = ssub.s32 %s27, 1
      %s33 = ssub.s32 %s27, 2
      %s34 = sadd.s32 %s27, 1
      %s35 = ssub.s32 %s27, %s34
      %p36 = scmp.eq.s32.totalorder %s35, 0
      %s38 = sadd.s32 %s37, 1
      %s39 = scalar_select %p36, %s37, %s38
      %p42 = pneg %p36
      %p43 = scmp.eq.s32.totalorder %s27, 1
      %p44 = por %p42, %p43
      %p45 = scmp.ne.s32.totalorder %s37, %s40
      %p46 = scmp.eq.s32.totalorder %s27, 0
      %p47 = por %p45, %p46
      %p48 = scmp.ne.s32.totalorder %s37, %s40
      %p49 = scmp.eq.s32.totalorder %s32, 1
      %p50 = por %p48, %p49
      %p51 = scmp.ne.s32.totalorder %s40, %s41
      %p52 = scmp.eq.s32.totalorder %s32, 0
      %p53 = por %p51, %p52
      %p54 = scmp.ne.s32.totalorder %s40, %s41
      %p55 = scmp.eq.s32.totalorder %s33, 1
      %p56 = por %p54, %p55
      %p58 = scmp.ne.s32.totalorder %s41, %s57
      %p59 = scmp.eq.s32.totalorder %s33, 0
      %p60 = por %p58, %p59
      %s61 = ssub.s32 %s27, %s34
      %p62 = scmp.eq.s32.totalorder %s61, 0
      %s64 = sadd.s32 %s63, 1
      %s65 = scalar_select %p62, %s63, %s64
      %p68 = pneg %p62
      %p69 = scmp.eq.s32.totalorder %s27, 1
      %p70 = por %p68, %p69
      %p71 = scmp.ne.s32.totalorder %s63, %s66
      %p72 = scmp.eq.s32.totalorder %s27, 0
      %p73 = por %p71, %p72
      %p74 = scmp.ne.s32.totalorder %s63, %s66
      %p75 = scmp.eq.s32.totalorder %s32, 1
      %p76 = por %p74, %p75
      %p77 = scmp.ne.s32.totalorder %s66, %s67
      %p78 = scmp.eq.s32.totalorder %s32, 0
      %p79 = por %p77, %p78
      %p80 = scmp.ne.s32.totalorder %s66, %s67
      %p81 = scmp.eq.s32.totalorder %s33, 1
      %p82 = por %p80, %p81
      %p84 = scmp.ne.s32.totalorder %s67, %s83
      %p85 = scmp.eq.s32.totalorder %s33, 0
      %p86 = por %p84, %p85
      %s88 = sadd.s32 %s87, 1
      %p91 = scmp.eq.s32.totalorder %s27, 1
      %p92 = scmp.ne.s32.totalorder %s87, %s89
      %p93 = scmp.eq.s32.totalorder %s27, 0
      %p94 = por %p92, %p93
      %p95 = scmp.ne.s32.totalorder %s87, %s89
      %p96 = scmp.eq.s32.totalorder %s32, 1
      %p97 = por %p95, %p96
      %p98 = scmp.ne.s32.totalorder %s89, %s90
      %p99 = scmp.eq.s32.totalorder %s32, 0
      %p100 = por %p98, %p99
      %p101 = scmp.ne.s32.totalorder %s89, %s90
      %p102 = scmp.eq.s32.totalorder %s33, 1
      %p103 = por %p101, %p102
      %p105 = scmp.ne.s32.totalorder %s90, %s104
      %p106 = scmp.eq.s32.totalorder %s33, 0
      %p107 = por %p105, %p106
      %s109 = sadd.s32 %s108, 1
      %p112 = scmp.eq.s32.totalorder %s27, 1
      %p113 = scmp.ne.s32.totalorder %s108, %s110
      %p114 = scmp.eq.s32.totalorder %s27, 0
      %p115 = por %p113, %p114
      %p116 = scmp.ne.s32.totalorder %s108, %s110
      %p117 = scmp.eq.s32.totalorder %s32, 1
      %p118 = por %p116, %p117
      %p119 = scmp.ne.s32.totalorder %s110, %s111
      %p120 = scmp.eq.s32.totalorder %s32, 0
      %p121 = por %p119, %p120
      %p122 = scmp.ne.s32.totalorder %s110, %s111
      %p123 = scmp.eq.s32.totalorder %s33, 1
      %p124 = por %p122, %p123
      %p126 = scmp.ne.s32.totalorder %s111, %s125
      %p127 = scmp.eq.s32.totalorder %s33, 0
      %p128 = por %p126, %p127
      %s130 = sadd.s32 %s129, 1
      %p133 = scmp.eq.s32.totalorder %s27, 1
      %p134 = scmp.ne.s32.totalorder %s129, %s131
      %p135 = scmp.eq.s32.totalorder %s27, 0
      %p136 = por %p134, %p135
      %p137 = scmp.ne.s32.totalorder %s129, %s131
      %p138 = scmp.eq.s32.totalorder %s32, 1
      %p139 = por %p137, %p138
      %p140 = scmp.ne.s32.totalorder %s131, %s132
      %p141 = scmp.eq.s32.totalorder %s32, 0
      %p142 = por %p140, %p141
      %p143 = scmp.ne.s32.totalorder %s131, %s132
      %p144 = scmp.eq.s32.totalorder %s33, 1
      %p145 = por %p143, %p144
      %p147 = scmp.ne.s32.totalorder %s132, %s146
      %p148 = scmp.eq.s32.totalorder %s33, 0
      %p149 = por %p147, %p148
      %s151 = sadd.s32 %s150, 1
      %p154 = scmp.eq.s32.totalorder %s27, 1
      %p155 = scmp.ne.s32.totalorder %s150, %s152
      %p156 = scmp.eq.s32.totalorder %s27, 0
      %p157 = por %p155, %p156
      %p158 = scmp.ne.s32.totalorder %s150, %s152
      %p159 = scmp.eq.s32.totalorder %s32, 1
      %p160 = por %p158, %p159
      %p161 = scmp.ne.s32.totalorder %s152, %s153
      %p162 = scmp.eq.s32.totalorder %s32, 0
      %p163 = por %p161, %p162
      %p164 = scmp.ne.s32.totalorder %s152, %s153
      %p165 = scmp.eq.s32.totalorder %s33, 1
      %p166 = por %p164, %p165
      %p168 = scmp.ne.s32.totalorder %s153, %s167
      %p169 = scmp.eq.s32.totalorder %s33, 0
      %p170 = por %p168, %p169
      %s172 = sadd.s32 %s171, 1
      %p175 = scmp.eq.s32.totalorder %s27, 1
      %p176 = scmp.ne.s32.totalorder %s171, %s173
      %p177 = scmp.eq.s32.totalorder %s27, 0
      %p178 = por %p176, %p177
      %p179 = scmp.ne.s32.totalorder %s171, %s173
      %p180 = scmp.eq.s32.totalorder %s32, 1
      %p181 = por %p179, %p180
      %p182 = scmp.ne.s32.totalorder %s173, %s174
      %p183 = scmp.eq.s32.totalorder %s32, 0
      %p184 = por %p182, %p183
      %p185 = scmp.ne.s32.totalorder %s173, %s174
      %p186 = scmp.eq.s32.totalorder %s33, 1
      %p187 = por %p185, %p186
      %p189 = scmp.ne.s32.totalorder %s174, %s188
      %p190 = scmp.eq.s32.totalorder %s33, 0
      %p191 = por %p189, %p190
      %s193 = sadd.s32 %s192, 1
      %p196 = scmp.eq.s32.totalorder %s27, 1
      %p197 = scmp.ne.s32.totalorder %s192, %s194
      %p198 = scmp.eq.s32.totalorder %s27, 0
      %p199 = por %p197, %p198
      %p200 = scmp.ne.s32.totalorder %s192, %s194
      %p201 = scmp.eq.s32.totalorder %s32, 1
      %p202 = por %p200, %p201
      %p203 = scmp.ne.s32.totalorder %s194, %s195
      %p204 = scmp.eq.s32.totalorder %s32, 0
      %p205 = por %p203, %p204
      %p206 = scmp.ne.s32.totalorder %s194, %s195
      %p207 = scmp.eq.s32.totalorder %s33, 1
      %p208 = por %p206, %p207
      %p210 = scmp.ne.s32.totalorder %s195, %s209
      %p211 = scmp.eq.s32.totalorder %s33, 0
      %p212 = por %p210, %p211
      %s214 = sadd.s32 %s213, 1
      %p217 = scmp.eq.s32.totalorder %s27, 1
      %p218 = scmp.ne.s32.totalorder %s213, %s215
      %p219 = scmp.eq.s32.totalorder %s27, 0
      %p220 = por %p218, %p219
      %p221 = scmp.ne.s32.totalorder %s213, %s215
      %p222 = scmp.eq.s32.totalorder %s32, 1
      %p223 = por %p221, %p222
      %p224 = scmp.ne.s32.totalorder %s215, %s216
      %p225 = scmp.eq.s32.totalorder %s32, 0
      %p226 = por %p224, %p225
      %p227 = scmp.ne.s32.totalorder %s215, %s216
      %p228 = scmp.eq.s32.totalorder %s33, 1
      %p229 = por %p227, %p228
      %p231 = scmp.ne.s32.totalorder %s216, %s230
      %p232 = scmp.eq.s32.totalorder %s33, 0
      %p233 = por %p231, %p232
      %s235 = sadd.s32 %s234, 1
      %p238 = scmp.eq.s32.totalorder %s27, 1
      %p239 = scmp.ne.s32.totalorder %s234, %s236
      %p240 = scmp.eq.s32.totalorder %s27, 0
      %p241 = por %p239, %p240
      %p242 = scmp.ne.s32.totalorder %s234, %s236
      %p243 = scmp.eq.s32.totalorder %s32, 1
      %p244 = por %p242, %p243
      %p245 = scmp.ne.s32.totalorder %s236, %s237
      %p246 = scmp.eq.s32.totalorder %s32, 0
      %p247 = por %p245, %p246
      %p248 = scmp.ne.s32.totalorder %s236, %s237
      %p249 = scmp.eq.s32.totalorder %s33, 1
      %p250 = por %p248, %p249
      %p252 = scmp.ne.s32.totalorder %s237, %s251
      %p253 = scmp.eq.s32.totalorder %s33, 0
      %p254 = por %p252, %p253
      %s255 = ssub.s32 %s27, %s34
      %p256 = scmp.eq.s32.totalorder %s255, 0
      %s258 = sadd.s32 %s257, 1
      %s259 = scalar_select %p256, %s257, %s258
      %p262 = pneg %p256
      %p263 = scmp.eq.s32.totalorder %s27, 1
      %p264 = por %p262, %p263
      %p265 = scmp.ne.s32.totalorder %s257, %s260
      %p266 = scmp.eq.s32.totalorder %s27, 0
      %p267 = por %p265, %p266
      %p268 = scmp.ne.s32.totalorder %s257, %s260
      %p269 = scmp.eq.s32.totalorder %s32, 1
      %p270 = por %p268, %p269
      %p271 = scmp.ne.s32.totalorder %s260, %s261
      %p272 = scmp.eq.s32.totalorder %s32, 0
      %p273 = por %p271, %p272
      %p274 = scmp.ne.s32.totalorder %s260, %s261
      %p275 = scmp.eq.s32.totalorder %s33, 1
      %p276 = por %p274, %p275
      %p278 = scmp.ne.s32.totalorder %s261, %s277
      %p279 = scmp.eq.s32.totalorder %s33, 0
      %p280 = por %p278, %p279
      %s281 = ssub.s32 %s27, %s34
      %p282 = scmp.eq.s32.totalorder %s281, 0
      %s284 = sadd.s32 %s283, 1
      %s285 = scalar_select %p282, %s283, %s284
      %p288 = pneg %p282
      %p289 = scmp.eq.s32.totalorder %s27, 1
      %p290 = por %p288, %p289
      %p291 = scmp.ne.s32.totalorder %s283, %s286
      %p292 = scmp.eq.s32.totalorder %s27, 0
      %p293 = por %p291, %p292
      %p294 = scmp.ne.s32.totalorder %s283, %s286
      %p295 = scmp.eq.s32.totalorder %s32, 1
      %p296 = por %p294, %p295
      %p297 = scmp.ne.s32.totalorder %s286, %s287
      %p298 = scmp.eq.s32.totalorder %s32, 0
      %p299 = por %p297, %p298
      %p300 = scmp.ne.s32.totalorder %s286, %s287
      %p301 = scmp.eq.s32.totalorder %s33, 1
      %p302 = por %p300, %p301
      %p304 = scmp.ne.s32.totalorder %s287, %s303
      %p305 = scmp.eq.s32.totalorder %s33, 0
      %p306 = por %p304, %p305
      %p307 = scmp.le.s32.totalorder 1, %s27
      %p308 = scmp.lt.s32.totalorder %s27, 3
      %p309 = pnand %p307, %p308
      %p310 = pneg %p309
      // Predicated region
      $region9: #{tpu_custom_call.1} parent=5 // pred_check
        _
      $region10: #{tpu_custom_call.1} parent=5 // pred_check_branch
        %312 = sbr.rel (%p309) target = $region12
      $region11: #{tpu_custom_call.1} parent=5 // pred_region
        %s313 = ssub.s32 %s27, 1
        // Predicated region
        $region13: #{tpu_custom_call.1} parent=11 // pred_check
          %p314 = pneg %p100
        $region14: #{tpu_custom_call.1} parent=11 // pred_check_branch
          %316 = sbr.rel (%p314) target = $region16
        $region15: #{tpu_custom_call.1} parent=11 // pred_region
          _
        $region16: #{tpu_custom_call.1} parent=11 // pred_fallthru
          _
        // Predicated region
        $region17: #{tpu_custom_call.1} parent=11 // pred_check
          %p317 = pneg %p121
        $region18: #{tpu_custom_call.1} parent=11 // pred_check_branch
          %319 = sbr.rel (%p317) target = $region20
        $region19: #{tpu_custom_call.1} parent=11 // pred_region
          _
        $region20: #{tpu_custom_call.1} parent=11 // pred_fallthru
          _
        // Predicated region
        $region21: #{tpu_custom_call.1} parent=11 // pred_check
          %p320 = pneg %p142
        $region22: #{tpu_custom_call.1} parent=11 // pred_check_branch
          %322 = sbr.rel (%p320) target = $region24
        $region23: #{tpu_custom_call.1} parent=11 // pred_region
          _
        $region24: #{tpu_custom_call.1} parent=11 // pred_fallthru
          _
        // Predicated region
        $region25: #{tpu_custom_call.1} parent=11 // pred_check
          %p323 = pneg %p163
        $region26: #{tpu_custom_call.1} parent=11 // pred_check_branch
          %325 = sbr.rel (%p323) target = $region28
        $region27: #{tpu_custom_call.1} parent=11 // pred_region
          _
        $region28: #{tpu_custom_call.1} parent=11 // pred_fallthru
          _
        // Predicated region
        $region29: #{tpu_custom_call.1} parent=11 // pred_check
          %p326 = pneg %p184
        $region30: #{tpu_custom_call.1} parent=11 // pred_check_branch
          %328 = sbr.rel (%p326) target = $region32
        $region31: #{tpu_custom_call.1} parent=11 // pred_region
          _
        $region32: #{tpu_custom_call.1} parent=11 // pred_fallthru
          _
        // Predicated region
        $region33: #{tpu_custom_call.1} parent=11 // pred_check
          %p329 = pneg %p205
        $region34: #{tpu_custom_call.1} parent=11 // pred_check_branch
          %331 = sbr.rel (%p329) target = $region36
        $region35: #{tpu_custom_call.1} parent=11 // pred_region
          _
        $region36: #{tpu_custom_call.1} parent=11 // pred_fallthru
          _
        // Predicated region
        $region37: #{tpu_custom_call.1} parent=11 // pred_check
          %p332 = pneg %p226
        $region38: #{tpu_custom_call.1} parent=11 // pred_check_branch
          %334 = sbr.rel (%p332) target = $region40
        $region39: #{tpu_custom_call.1} parent=11 // pred_region
          _
        $region40: #{tpu_custom_call.1} parent=11 // pred_fallthru
          _
        // Predicated region
        $region41: #{tpu_custom_call.1} parent=11 // pred_check
          %p335 = pneg %p247
        $region42: #{tpu_custom_call.1} parent=11 // pred_check_branch
          %337 = sbr.rel (%p335) target = $region44
        $region43: #{tpu_custom_call.1} parent=11 // pred_region
          _
        $region44: #{tpu_custom_call.1} parent=11 // pred_fallthru
          _
      $region12: #{tpu_custom_call.1} parent=5 // pred_fallthru
        _
      %p338 = scmp.lt.s32.totalorder %s27, 2
      // Predicated region
      $region45: #{tpu_custom_call.1} parent=5 // pred_check
        %p339 = pneg %p338
      $region46: #{tpu_custom_call.1} parent=5 // pred_check_branch
        %341 = sbr.rel (%p339) target = $region48
      $region47: #{tpu_custom_call.1} parent=5 // pred_region
        // Predicated region
        $region49: #{tpu_custom_call.1} parent=47 // pred_check
          %p342 = pneg %p47
        $region50: #{tpu_custom_call.1} parent=47 // pred_check_branch
          %344 = sbr.rel (%p342) target = $region52
        $region51: #{tpu_custom_call.1} parent=47 // pred_region
          %p345 = scmp.lt.s32.totalorder %s27, 1
          %s346 = scalar_select %p345, %s27, 1
          %s347 = smul.addr %s346, 2
          %s348 = smul.addr %s347, 8
          %s349 = scalar_lea.vmem %s0, %s348
        $region52: #{tpu_custom_call.1} parent=47 // pred_fallthru
          _
        // Predicated region
        $region53: #{tpu_custom_call.1} parent=47 // pred_check
          %p350 = pneg %p73
        $region54: #{tpu_custom_call.1} parent=47 // pred_check_branch
          %352 = sbr.rel (%p350) target = $region56
        $region55: #{tpu_custom_call.1} parent=47 // pred_region
          %s353 = sand.u32 %s63, 1
          %s354 = scalar_lea.sflag [#allocation3], %s353
          %s355 = sand.u32 %s63, 1
          %s356 = smul.addr %s355, 16
          %s357 = scalar_lea.vmem [#allocation2], %s356
          %s359 = ssub.s32 256, 256
          %360 = vsyncadd %s354, %s359
          %s361 = smul.addr %s27, 2
          %s362 = smul.addr %s361, 128
          %s363 = scalar_lea.hbm %s1, %s362
          %s365 = sshll.u32 %s357, 4
          %s366 = int_to_ptr.vmem [resolvable:$true] %s365
          %368 = dma.hbm_to_vmem [thread:$0]  %s363, 256, %s366, %s354
        $region56: #{tpu_custom_call.1} parent=47 // pred_fallthru
          _
      $region48: #{tpu_custom_call.1} parent=5 // pred_fallthru
        _
      %p369 = scmp.le.s32.totalorder 1, %s27
      %p370 = scmp.lt.s32.totalorder %s27, 3
      %p371 = pnand %p369, %p370
      %p372 = pneg %p371
      // Predicated region
      $region57: #{tpu_custom_call.1} parent=5 // pred_check
        _
      $region58: #{tpu_custom_call.1} parent=5 // pred_check_branch
        %374 = sbr.rel (%p371) target = $region60
      $region59: #{tpu_custom_call.1} parent=5 // pred_region
        %s375 = ssub.s32 %s27, 1
        %s376 = sand.u32 %s66, 1
        %s377 = scalar_lea.sflag [#allocation3], %s376
        %s378 = sand.u32 %s66, 1
        %s379 = smul.addr %s378, 16
        %s380 = scalar_lea.vmem [#allocation2], %s379
        // Predicated region
        $region61: #{tpu_custom_call.1} parent=59 // pred_check
          %p381 = pneg %p79
        $region62: #{tpu_custom_call.1} parent=59 // pred_check_branch
          %383 = sbr.rel (%p381) target = $region64
        $region63: #{tpu_custom_call.1} parent=59 // pred_region
          %384 = dma.done %s377, 256
        $region64: #{tpu_custom_call.1} parent=59 // pred_fallthru
          _
        %p385 = scmp.lt.s32.totalorder %s32, 1
        %s386 = scalar_select %p385, %s32, 1
        %s387 = smul.addr %s386, 2
        %s388 = smul.addr %s387, 8
        %s389 = scalar_lea.vmem %s0, %s388
        %p390 = pneg %p53
        %p391 = pneg %p50
        %s392 = sand.u32 %s66, 1
        %s393 = scalar_lea.sflag [#allocation3], %s392
        %s394 = sand.u32 %s66, 1
        %s395 = smul.addr %s394, 16
        %s396 = scalar_lea.vmem [#allocation2], %s395
        %p397 = pneg %p79
        %p398 = pneg %p76
        %p399 = pneg %p100
        %p400 = pneg %p97
        %p401 = pneg %p121
        %p402 = pneg %p118
        %p403 = pneg %p142
        %p404 = pneg %p139
        %p405 = pneg %p163
        %p406 = pneg %p160
        %p407 = pneg %p184
        %p408 = pneg %p181
        %p409 = pneg %p205
        %p410 = pneg %p202
        %p411 = pneg %p226
        %p412 = pneg %p223
        %p413 = pneg %p247
        %p414 = pneg %p244
        %p415 = pneg %p273
        %p416 = pneg %p270
        %s417 = sand.u32 %s260, 1
        %s418 = scalar_lea.sflag [#allocation4], %s417
        %s419 = sand.u32 %s260, 1
        %s420 = smul.addr %s419, 16
        %s421 = scalar_lea.vmem [#allocation5], %s420
        %p422 = pneg %p299
        %p423 = pneg %p296
        %s424 = sand.u32 %s286, 1
        %s425 = scalar_lea.sflag [#allocation7], %s424
        %s426 = sand.u32 %s286, 1
        %s427 = smul.addr %s426, 16
        %s428 = scalar_lea.vmem [#allocation6], %s427
        %p429 = scmp.lt.s32.totalorder %s32, 1
        %s430 = scalar_select %p429, %s32, 1
        %s431 = smul.addr %s430, 2
        %s432 = smul.addr %s431, 8
        %s433 = scalar_lea.vmem %s0, %s432
        %v435 = vld [vmem:[%s433] sm:$0xff]
        %v436 = vld [vmem:[%s433 + $0x8] sm:$0xff]
        %v437 = vld [vmem:[%s380] sm:$0xff]
        %v438 = vld [vmem:[%s380 + $0x8] sm:$0xff]
        %v439 = vld [vmem:[%s2] sm:$0xff]
        %v440 = vld [vmem:[%s3] sm:$0xff]
        %442 = vset.pattern.permute.xlu0 0
        %443 = vperm.xlu0 %442, %v440
        %v444 = vpop.permute.xlu0 %443
        %vm446 = vcmask 64512
        %v448 = vsel %vm446, %v439, 0
        %450 = vmatprep.subr.mxu0 %v436
        %451 = vmatpush1.msra.mxu0 %v435
        %452 = vmatprep.subr.mxu0 0.0
        %453 = vmatpush1.msra.mxu0 0.0
        %454 = vmatprep.subr.mxu0 0.0
        %455 = vmatpush1.msra.mxu0 0.0
        %456 = vmatprep.subr.mxu0 0.0
        %457 = vmatpush1.msra.mxu0 0.0
        %458 = vmatprep.subr.mxu0 0.0
        %459 = vmatpush1.msra.mxu0 0.0
        %460 = vmatprep.subr.mxu0 0.0
        %461 = vmatpush1.msra.mxu0 0.0
        %462 = vmatprep.subr.mxu0 0.0
        %463 = vmatpush1.msra.mxu0 0.0
        %464 = vmatprep.subr.mxu0 0.0
        %465 = vmatpush1.msra.mxu0 0.0
        %466 = vmatprep.subr.mxu0 0.0
        %467 = vmatpush1.msra.mxu0 0.0
        %468 = vmatprep.subr.mxu0 0.0
        %469 = vmatpush1.msra.mxu0 0.0
        %470 = vmatprep.subr.mxu0 0.0
        %471 = vmatpush1.msra.mxu0 0.0
        %472 = vmatprep.subr.mxu0 0.0
        %473 = vmatpush1.msra.mxu0 0.0
        %474 = vmatprep.subr.mxu0 0.0
        %475 = vmatpush1.msra.mxu0 0.0
        %476 = vmatprep.subr.mxu0 0.0
        %477 = vmatpush1.msra.mxu0 0.0
        %478 = vmatprep.subr.mxu0 0.0
        %479 = vmatpush1.msra.mxu0 0.0
        %480 = vmatprep.subr.mxu0 0.0
        %481 = vmatpush1.msra.mxu0 0.0
        %482 = vmatprep.subr.mxu0 0.0
        %483 = vmatpush1.msra.mxu0 0.0
        %484 = vmatprep.subr.mxu0 0.0
        %485 = vmatpush1.msra.mxu0 0.0
        %486 = vmatprep.subr.mxu0 0.0
        %487 = vmatpush1.msra.mxu0 0.0
        %488 = vmatprep.subr.mxu0 0.0
        %489 = vmatpush1.msra.mxu0 0.0
        %490 = vmatprep.subr.mxu0 0.0
        %491 = vmatpush1.msra.mxu0 0.0
        %492 = vmatprep.subr.mxu0 0.0
        %493 = vmatpush1.msra.mxu0 0.0
        %494 = vmatprep.subr.mxu0 0.0
        %495 = vmatpush1.msra.mxu0 0.0
        %496 = vmatprep.subr.mxu0 0.0
        %497 = vmatpush1.msra.mxu0 0.0
        %498 = vmatprep.subr.mxu0 0.0
        %499 = vmatpush1.msra.mxu0 0.0
        %500 = vmatprep.subr.mxu0 0.0
        %501 = vmatpush1.msra.mxu0 0.0
        %502 = vmatprep.subr.mxu0 0.0
        %503 = vmatpush1.msra.mxu0 0.0
        %504 = vmatprep.subr.mxu0 0.0
        %505 = vmatpush1.msra.mxu0 0.0
        %506 = vmatprep.subr.mxu0 0.0
        %507 = vmatpush1.msra.mxu0 0.0
        %508 = vmatprep.subr.mxu0 0.0
        %509 = vmatpush1.msra.mxu0 0.0
        %510 = vmatprep.subr.mxu0 0.0
        %511 = vmatpush1.msra.mxu0 0.0
        %512 = vmatprep.subr.mxu0 0.0
        %513 = vmatpush1.msra.mxu0 0.0
        %514 = vmatprep.mubr.f32.mxu0 0.0
        %515 = vmatmul.mubr.f32.gmra.mrb[0].mxu0 %v448
        %v516 = vpop.f32.mrb[0].mxu0
        %v517 = vadd.f32 %v444, %v516
        %v518 = vpop.f32.mrb[0].mxu0
        %v519 = vadd.f32 %v444, %v518
        %520 = vdwg.mxu0
        %v521 = vld [vmem:[%s4] sm:$0xff]
        %v522 = vld [vmem:[%s5] sm:$0xff]
        %524 = vset.pattern.permute.xlu0 0
        %525 = vperm.xlu0 %524, %v522
        %v526 = vpop.permute.xlu0 %525
        %v529 = vsel %vm446, %v521, 0
        %531 = vmatprep.subr.mxu0 %v438
        %532 = vmatpush1.msra.mxu0 %v437
        %533 = vmatprep.subr.mxu0 0.0
        %534 = vmatpush1.msra.mxu0 0.0
        %535 = vmatprep.subr.mxu0 0.0
        %536 = vmatpush1.msra.mxu0 0.0
        %537 = vmatprep.subr.mxu0 0.0
        %538 = vmatpush1.msra.mxu0 0.0
        %539 = vmatprep.subr.mxu0 0.0
        %540 = vmatpush1.msra.mxu0 0.0
        %541 = vmatprep.subr.mxu0 0.0
        %542 = vmatpush1.msra.mxu0 0.0
        %543 = vmatprep.subr.mxu0 0.0
        %544 = vmatpush1.msra.mxu0 0.0
        %545 = vmatprep.subr.mxu0 0.0
        %546 = vmatpush1.msra.mxu0 0.0
        %547 = vmatprep.subr.mxu0 0.0
        %548 = vmatpush1.msra.mxu0 0.0
        %549 = vmatprep.subr.mxu0 0.0
        %550 = vmatpush1.msra.mxu0 0.0
        %551 = vmatprep.subr.mxu0 0.0
        %552 = vmatpush1.msra.mxu0 0.0
        %553 = vmatprep.subr.mxu0 0.0
        %554 = vmatpush1.msra.mxu0 0.0
        %555 = vmatprep.subr.mxu0 0.0
        %556 = vmatpush1.msra.mxu0 0.0
        %557 = vmatprep.subr.mxu0 0.0
        %558 = vmatpush1.msra.mxu0 0.0
        %559 = vmatprep.subr.mxu0 0.0
        %560 = vmatpush1.msra.mxu0 0.0
        %561 = vmatprep.subr.mxu0 0.0
        %562 = vmatpush1.msra.mxu0 0.0
        %563 = vmatprep.subr.mxu0 0.0
        %564 = vmatpush1.msra.mxu0 0.0
        %565 = vmatprep.subr.mxu0 0.0
        %566 = vmatpush1.msra.mxu0 0.0
        %567 = vmatprep.subr.mxu0 0.0
        %568 = vmatpush1.msra.mxu0 0.0
        %569 = vmatprep.subr.mxu0 0.0
        %570 = vmatpush1.msra.mxu0 0.0
        %571 = vmatprep.subr.mxu0 0.0
        %572 = vmatpush1.msra.mxu0 0.0
        %573 = vmatprep.subr.mxu0 0.0
        %574 = vmatpush1.msra.mxu0 0.0
        %575 = vmatprep.subr.mxu0 0.0
        %576 = vmatpush1.msra.mxu0 0.0
        %577 = vmatprep.subr.mxu0 0.0
        %578 = vmatpush1.msra.mxu0 0.0
        %579 = vmatprep.subr.mxu0 0.0
        %580 = vmatpush1.msra.mxu0 0.0
        %581 = vmatprep.subr.mxu0 0.0
        %582 = vmatpush1.msra.mxu0 0.0
        %583 = vmatprep.subr.mxu0 0.0
        %584 = vmatpush1.msra.mxu0 0.0
        %585 = vmatprep.subr.mxu0 0.0
        %586 = vmatpush1.msra.mxu0 0.0
        %587 = vmatprep.subr.mxu0 0.0
        %588 = vmatpush1.msra.mxu0 0.0
        %589 = vmatprep.subr.mxu0 0.0
        %590 = vmatpush1.msra.mxu0 0.0
        %591 = vmatprep.subr.mxu0 0.0
        %592 = vmatpush1.msra.mxu0 0.0
        %593 = vmatprep.subr.mxu0 0.0
        %594 = vmatpush1.msra.mxu0 0.0
        %595 = vmatprep.mubr.f32.mxu0 0.0
        %596 = vmatmul.mubr.f32.gmra.mrb[0].mxu0 %v529
        %v597 = vpop.f32.mrb[0].mxu0
        %v598 = vadd.f32 %v526, %v597
        %v599 = vpop.f32.mrb[0].mxu0
        %v600 = vadd.f32 %v526, %v599
        %601 = vdwg.mxu0
        %v602 = vpack.c.bf16 %v517, %v517
        %v603 = vpack.c.bf16 %v519, %v519
        %v604 = vpack.c.bf16 %v598, %v598
        %v605 = vpack.c.bf16 %v600, %v600
        %606 = vmatprep.subr.bf16.mxu0 %v605
        %607 = vmatpush1.bf16.xpose.msra.mxu0 %v604
        %608 = vmatprep.subr.bf16.mxu0 0
        %609 = vmatpush1.bf16.xpose.msra.mxu0 0
        %610 = vmatprep.subr.bf16.mxu0 0
        %611 = vmatpush1.bf16.xpose.msra.mxu0 0
        %612 = vmatprep.subr.bf16.mxu0 0
        %613 = vmatpush1.bf16.xpose.msra.mxu0 0
        %614 = vmatprep.subr.bf16.mxu0 0
        %615 = vmatpush1.bf16.xpose.msra.mxu0 0
        %616 = vmatprep.subr.bf16.mxu0 0
        %617 = vmatpush1.bf16.xpose.msra.mxu0 0
        %618 = vmatprep.subr.bf16.mxu0 0
        %619 = vmatpush1.bf16.xpose.msra.mxu0 0
        %620 = vmatprep.subr.bf16.mxu0 0
        %621 = vmatpush1.bf16.xpose.msra.mxu0 0
        %622 = vmatprep.subr.bf16.mxu0 0
        %623 = vmatpush1.bf16.xpose.msra.mxu0 0
        %624 = vmatprep.subr.bf16.mxu0 0
        %625 = vmatpush1.bf16.xpose.msra.mxu0 0
        %626 = vmatprep.subr.bf16.mxu0 0
        %627 = vmatpush1.bf16.xpose.msra.mxu0 0
        %628 = vmatprep.subr.bf16.mxu0 0
        %629 = vmatpush1.bf16.xpose.msra.mxu0 0
        %630 = vmatprep.subr.bf16.mxu0 0
        %631 = vmatpush1.bf16.xpose.msra.mxu0 0
        %632 = vmatprep.subr.bf16.mxu0 0
        %633 = vmatpush1.bf16.xpose.msra.mxu0 0
        %634 = vmatprep.subr.bf16.mxu0 0
        %635 = vmatpush1.bf16.xpose.msra.mxu0 0
        %636 = vmatprep.subr.bf16.mxu0 0
        %637 = vmatpush1.bf16.xpose.msra.mxu0 0
        %638 = vmatprep.mubr.bf16.mxu0 %v603
        %639 = vmatmul.mubr.bf16.gmra.mrb[0].mxu0 %v602
        %v640 = vpop.f32.mrb[0].mxu0
        %v641 = vadd.f32 0.0, %v640
        %v642 = vpop.f32.mrb[0].mxu0
        %v643 = vpop.f32.mrb[0].mxu0
        %v644 = vpop.f32.mrb[0].mxu0
        %645 = vdwg.mxu0
        %646 = vmatprep.subr.bf16.mxu0 %v603
        %647 = vmatpush1.bf16.xpose.msra.mxu0 %v602
        %648 = vmatprep.subr.bf16.mxu0 0
        %649 = vmatpush1.bf16.xpose.msra.mxu0 0
        %650 = vmatprep.subr.bf16.mxu0 0
        %651 = vmatpush1.bf16.xpose.msra.mxu0 0
        %652 = vmatprep.subr.bf16.mxu0 0
        %653 = vmatpush1.bf16.xpose.msra.mxu0 0
        %654 = vmatprep.subr.bf16.mxu0 0
        %655 = vmatpush1.bf16.xpose.msra.mxu0 0
        %656 = vmatprep.subr.bf16.mxu0 0
        %657 = vmatpush1.bf16.xpose.msra.mxu0 0
        %658 = vmatprep.subr.bf16.mxu0 0
        %659 = vmatpush1.bf16.xpose.msra.mxu0 0
        %660 = vmatprep.subr.bf16.mxu0 0
        %661 = vmatpush1.bf16.xpose.msra.mxu0 0
        %662 = vmatprep.subr.bf16.mxu0 0
        %663 = vmatpush1.bf16.xpose.msra.mxu0 0
        %664 = vmatprep.subr.bf16.mxu0 0
        %665 = vmatpush1.bf16.xpose.msra.mxu0 0
        %666 = vmatprep.subr.bf16.mxu0 0
        %667 = vmatpush1.bf16.xpose.msra.mxu0 0
        %668 = vmatprep.subr.bf16.mxu0 0
        %669 = vmatpush1.bf16.xpose.msra.mxu0 0
        %670 = vmatprep.subr.bf16.mxu0 0
        %671 = vmatpush1.bf16.xpose.msra.mxu0 0
        %672 = vmatprep.subr.bf16.mxu0 0
        %673 = vmatpush1.bf16.xpose.msra.mxu0 0
        %674 = vmatprep.subr.bf16.mxu0 0
        %675 = vmatpush1.bf16.xpose.msra.mxu0 0
        %676 = vmatprep.subr.bf16.mxu0 0
        %677 = vmatpush1.bf16.xpose.msra.mxu0 0
        %678 = vmatprep.mubr.bf16.mxu0 %v605
        %679 = vmatmul.mubr.bf16.gmra.mrb[0].mxu0 %v604
        %v680 = vpop.f32.mrb[0].mxu0
        %v681 = vadd.f32 0.0, %v680
        %v682 = vpop.f32.mrb[0].mxu0
        %v683 = vpop.f32.mrb[0].mxu0
        %v684 = vpop.f32.mrb[0].mxu0
        %685 = vdwg.mxu0
        %686 = vxpose.xlu0.c.b16.start [1/8] %v602, 128
        %687 = vxpose.xlu0.c.b16.cont [2/8] 0, 128
        %688 = vxpose.xlu0.c.b16.cont [3/8] 0, 128
        %689 = vxpose.xlu0.c.b16.cont [4/8] 0, 128
        %690 = vxpose.xlu0.c.b16.cont [5/8] 0, 128
        %691 = vxpose.xlu0.c.b16.cont [6/8] 0, 128
        %692 = vxpose.xlu0.c.b16.cont [7/8] 0, 128
        %693 = vxpose.xlu0.c.b16.end [8/8] 0, 128
        %v694 = vpop.trf.xlu0
        %v695 = vpop.trf.xlu0
        %v696 = vpop.trf.xlu0
        %v697 = vpop.trf.xlu0
        %v698 = vpop.trf.xlu0
        %v699 = vpop.trf.xlu0
        %v700 = vpop.trf.xlu0
        %v701 = vpop.trf.xlu0
        %702 = vxpose.xlu0.c.b16.start [1/8] %v603, 128
        %703 = vxpose.xlu0.c.b16.cont [2/8] 0, 128
        %704 = vxpose.xlu0.c.b16.cont [3/8] 0, 128
        %705 = vxpose.xlu0.c.b16.cont [4/8] 0, 128
        %706 = vxpose.xlu0.c.b16.cont [5/8] 0, 128
        %707 = vxpose.xlu0.c.b16.cont [6/8] 0, 128
        %708 = vxpose.xlu0.c.b16.cont [7/8] 0, 128
        %709 = vxpose.xlu0.c.b16.end [8/8] 0, 128
        %v710 = vpop.trf.xlu0
        %v711 = vpop.trf.xlu0
        %v712 = vpop.trf.xlu0
        %v713 = vpop.trf.xlu0
        %v714 = vpop.trf.xlu0
        %v715 = vpop.trf.xlu0
        %v716 = vpop.trf.xlu0
        %v717 = vpop.trf.xlu0
        %vm718 = vcmask 31744
        %v720 = vsel %vm718, %v694, 0
        %v723 = vsel %vm718, %v695, 0
        %v726 = vsel %vm718, %v696, 0
        %v729 = vsel %vm718, %v697, 0
        %v732 = vsel %vm718, %v698, 0
        %v735 = vsel %vm718, %v699, 0
        %v738 = vsel %vm718, %v700, 0
        %v741 = vsel %vm718, %v701, 0
        %v744 = vsel %vm718, %v710, 0
        %v747 = vsel %vm718, %v711, 0
        %v750 = vsel %vm718, %v712, 0
        %v753 = vsel %vm718, %v713, 0
        %v756 = vsel %vm718, %v714, 0
        %v759 = vsel %vm718, %v715, 0
        %v762 = vsel %vm718, %v716, 0
        %v765 = vsel %vm718, %v717, 0
        %vm767 = vcmask 1041408
        %v769 = vsel %vm767, %v604, 0
        %v772 = vsel %vm767, %v605, 0
        %774 = vmatprep.subr.bf16.mxu0 %v772
        %775 = vmatpush1.bf16.msra.mxu0 %v769
        %776 = vmatprep.subr.bf16.mxu0 0
        %777 = vmatpush1.bf16.msra.mxu0 0
        %778 = vmatprep.subr.bf16.mxu0 0
        %779 = vmatpush1.bf16.msra.mxu0 0
        %780 = vmatprep.subr.bf16.mxu0 0
        %781 = vmatpush1.bf16.msra.mxu0 0
        %782 = vmatprep.subr.bf16.mxu0 0
        %783 = vmatpush1.bf16.msra.mxu0 0
        %784 = vmatprep.subr.bf16.mxu0 0
        %785 = vmatpush1.bf16.msra.mxu0 0
        %786 = vmatprep.subr.bf16.mxu0 0
        %787 = vmatpush1.bf16.msra.mxu0 0
        %788 = vmatprep.subr.bf16.mxu0 0
        %789 = vmatpush1.bf16.msra.mxu0 0
        %790 = vmatprep.subr.bf16.mxu0 0
        %791 = vmatpush1.bf16.msra.mxu0 0
        %792 = vmatprep.subr.bf16.mxu0 0
        %793 = vmatpush1.bf16.msra.mxu0 0
        %794 = vmatprep.subr.bf16.mxu0 0
        %795 = vmatpush1.bf16.msra.mxu0 0
        %796 = vmatprep.subr.bf16.mxu0 0
        %797 = vmatpush1.bf16.msra.mxu0 0
        %798 = vmatprep.subr.bf16.mxu0 0
        %799 = vmatpush1.bf16.msra.mxu0 0
        %800 = vmatprep.subr.bf16.mxu0 0
        %801 = vmatpush1.bf16.msra.mxu0 0
        %802 = vmatprep.subr.bf16.mxu0 0
        %803 = vmatpush1.bf16.msra.mxu0 0
        %804 = vmatprep.subr.bf16.mxu0 0
        %805 = vmatpush1.bf16.msra.mxu0 0
        %806 = vmatprep.mubr.bf16.mxu0 0
        %807 = vmatmul.mubr.bf16.gmra.mrb[0].mxu0 %v720
        %v808 = vpop.f32.mrb[0].mxu0
        %v809 = vadd.f32 0.0, %v808
        %v810 = vpop.f32.mrb[0].mxu0
        %v811 = vadd.f32 0.0, %v810
        %v812 = vpop.f32.mrb[0].mxu0
        %v813 = vadd.f32 0.0, %v812
        %v814 = vpop.f32.mrb[0].mxu0
        %v815 = vadd.f32 0.0, %v814
        %816 = vmatprep.mubr.bf16.mxu0 0
        %817 = vmatmul.mubr.bf16.gmra.mrb[0].mxu0 %v723
        %v818 = vpop.f32.mrb[0].mxu0
        %v819 = vadd.f32 0.0, %v818
        %v820 = vpop.f32.mrb[0].mxu0
        %v821 = vadd.f32 0.0, %v820
        %v822 = vpop.f32.mrb[0].mxu0
        %v823 = vadd.f32 0.0, %v822
        %v824 = vpop.f32.mrb[0].mxu0
        %v825 = vadd.f32 0.0, %v824
        %826 = vmatprep.mubr.bf16.mxu0 0
        %827 = vmatmul.mubr.bf16.gmra.mrb[0].mxu0 %v726
        %v828 = vpop.f32.mrb[0].mxu0
        %v829 = vadd.f32 0.0, %v828
        %v830 = vpop.f32.mrb[0].mxu0
        %v831 = vadd.f32 0.0, %v830
        %v832 = vpop.f32.mrb[0].mxu0
        %v833 = vadd.f32 0.0, %v832
        %v834 = vpop.f32.mrb[0].mxu0
        %v835 = vadd.f32 0.0, %v834
        %836 = vmatprep.mubr.bf16.mxu0 0
        %837 = vmatmul.mubr.bf16.gmra.mrb[0].mxu0 %v729
        %v838 = vpop.f32.mrb[0].mxu0
        %v839 = vadd.f32 0.0, %v838
        %v840 = vpop.f32.mrb[0].mxu0
        %v841 = vadd.f32 0.0, %v840
        %v842 = vpop.f32.mrb[0].mxu0
        %v843 = vadd.f32 0.0, %v842
        %v844 = vpop.f32.mrb[0].mxu0
        %v845 = vadd.f32 0.0, %v844
        %846 = vmatprep.mubr.bf16.mxu0 0
        %847 = vmatmul.mubr.bf16.gmra.mrb[0].mxu0 %v732
        %v848 = vpop.f32.mrb[0].mxu0
        %v849 = vadd.f32 0.0, %v848
        %v850 = vpop.f32.mrb[0].mxu0
        %v851 = vadd.f32 0.0, %v850
        %v852 = vpop.f32.mrb[0].mxu0
        %v853 = vadd.f32 0.0, %v852
        %v854 = vpop.f32.mrb[0].mxu0
        %v855 = vadd.f32 0.0, %v854
        %856 = vmatprep.mubr.bf16.mxu0 0
        %857 = vmatmul.mubr.bf16.gmra.mrb[0].mxu0 %v735
        %v858 = vpop.f32.mrb[0].mxu0
        %v859 = vadd.f32 0.0, %v858
        %v860 = vpop.f32.mrb[0].mxu0
        %v861 = vadd.f32 0.0, %v860
        %v862 = vpop.f32.mrb[0].mxu0
        %v863 = vadd.f32 0.0, %v862
        %v864 = vpop.f32.mrb[0].mxu0
        %v865 = vadd.f32 0.0, %v864
        %866 = vmatprep.mubr.bf16.mxu0 0
        %867 = vmatmul.mubr.bf16.gmra.mrb[0].mxu0 %v738
        %v868 = vpop.f32.mrb[0].mxu0
        %v869 = vadd.f32 0.0, %v868
        %v870 = vpop.f32.mrb[0].mxu0
        %v871 = vadd.f32 0.0, %v870
        %v872 = vpop.f32.mrb[0].mxu0
        %v873 = vadd.f32 0.0, %v872
        %v874 = vpop.f32.mrb[0].mxu0
        %v875 = vadd.f32 0.0, %v874
        %876 = vmatprep.mubr.bf16.mxu0 0
        %877 = vmatmul.mubr.bf16.gmra.mrb[0].mxu0 %v741
        %v878 = vpop.f32.mrb[0].mxu0
        %v879 = vadd.f32 0.0, %v878
        %v880 = vpop.f32.mrb[0].mxu0
        %v881 = vadd.f32 0.0, %v880
        %v882 = vpop.f32.mrb[0].mxu0
        %v883 = vadd.f32 0.0, %v882
        %v884 = vpop.f32.mrb[0].mxu0
        %v885 = vadd.f32 0.0, %v884
        %886 = vmatprep.mubr.bf16.mxu0 0
        %887 = vmatmul.mubr.bf16.gmra.mrb[0].mxu0 %v744
        %v888 = vpop.f32.mrb[0].mxu0
        %v889 = vadd.f32 0.0, %v888
        %v890 = vpop.f32.mrb[0].mxu0
        %v891 = vadd.f32 0.0, %v890
        %v892 = vpop.f32.mrb[0].mxu0
        %v893 = vadd.f32 0.0, %v892
        %v894 = vpop.f32.mrb[0].mxu0
        %v895 = vadd.f32 0.0, %v894
        %896 = vmatprep.mubr.bf16.mxu0 0
        %897 = vmatmul.mubr.bf16.gmra.mrb[0].mxu0 %v747
        %v898 = vpop.f32.mrb[0].mxu0
        %v899 = vadd.f32 0.0, %v898
        %v900 = vpop.f32.mrb[0].mxu0
        %v901 = vadd.f32 0.0, %v900
        %v902 = vpop.f32.mrb[0].mxu0
        %v903 = vadd.f32 0.0, %v902
        %v904 = vpop.f32.mrb[0].mxu0
        %v905 = vadd.f32 0.0, %v904
        %906 = vmatprep.mubr.bf16.mxu0 0
        %907 = vmatmul.mubr.bf16.gmra.mrb[0].mxu0 %v750
        %v908 = vpop.f32.mrb[0].mxu0
        %v909 = vadd.f32 0.0, %v908
        %v910 = vpop.f32.mrb[0].mxu0
        %v911 = vadd.f32 0.0, %v910
        %v912 = vpop.f32.mrb[0].mxu0
        %v913 = vadd.f32 0.0, %v912
        %v914 = vpop.f32.mrb[0].mxu0
        %v915 = vadd.f32 0.0, %v914
        %916 = vmatprep.mubr.bf16.mxu0 0
        %917 = vmatmul.mubr.bf16.gmra.mrb[0].mxu0 %v753
        %v918 = vpop.f32.mrb[0].mxu0
        %v919 = vadd.f32 0.0, %v918
        %v920 = vpop.f32.mrb[0].mxu0
        %v921 = vadd.f32 0.0, %v920
        %v922 = vpop.f32.mrb[0].mxu0
        %v923 = vadd.f32 0.0, %v922
        %v924 = vpop.f32.mrb[0].mxu0
        %v925 = vadd.f32 0.0, %v924
        %926 = vmatprep.mubr.bf16.mxu0 0
        %927 = vmatmul.mubr.bf16.gmra.mrb[0].mxu0 %v756
        %v928 = vpop.f32.mrb[0].mxu0
        %v929 = vadd.f32 0.0, %v928
        %v930 = vpop.f32.mrb[0].mxu0
        %v931 = vadd.f32 0.0, %v930
        %v932 = vpop.f32.mrb[0].mxu0
        %v933 = vadd.f32 0.0, %v932
        %v934 = vpop.f32.mrb[0].mxu0
        %v935 = vadd.f32 0.0, %v934
        %936 = vmatprep.mubr.bf16.mxu0 0
        %937 = vmatmul.mubr.bf16.gmra.mrb[0].mxu0 %v759
        %v938 = vpop.f32.mrb[0].mxu0
        %v939 = vadd.f32 0.0, %v938
        %v940 = vpop.f32.mrb[0].mxu0
        %v941 = vadd.f32 0.0, %v940
        %v942 = vpop.f32.mrb[0].mxu0
        %v943 = vadd.f32 0.0, %v942
        %v944 = vpop.f32.mrb[0].mxu0
        %v945 = vadd.f32 0.0, %v944
        %946 = vmatprep.mubr.bf16.mxu0 0
        %947 = vmatmul.mubr.bf16.gmra.mrb[0].mxu0 %v762
        %v948 = vpop.f32.mrb[0].mxu0
        %v949 = vadd.f32 0.0, %v948
        %v950 = vpop.f32.mrb[0].mxu0
        %v951 = vadd.f32 0.0, %v950
        %v952 = vpop.f32.mrb[0].mxu0
        %v953 = vadd.f32 0.0, %v952
        %v954 = vpop.f32.mrb[0].mxu0
        %v955 = vadd.f32 0.0, %v954
        %956 = vmatprep.mubr.bf16.mxu0 0
        %957 = vmatmul.mubr.bf16.gmra.mrb[0].mxu0 %v765
        %v958 = vpop.f32.mrb[0].mxu0
        %v959 = vadd.f32 0.0, %v958
        %v960 = vpop.f32.mrb[0].mxu0
        %v961 = vadd.f32 0.0, %v960
        %v962 = vpop.f32.mrb[0].mxu0
        %v963 = vadd.f32 0.0, %v962
        %v964 = vpop.f32.mrb[0].mxu0
        %v965 = vadd.f32 0.0, %v964
        %966 = vdwg.mxu0
        %967 = vxpose.xlu0.c.b16.start [1/8] %v604, 128
        %968 = vxpose.xlu0.c.b16.cont [2/8] 0, 128
        %969 = vxpose.xlu0.c.b16.cont [3/8] 0, 128
        %970 = vxpose.xlu0.c.b16.cont [4/8] 0, 128
        %971 = vxpose.xlu0.c.b16.cont [5/8] 0, 128
        %972 = vxpose.xlu0.c.b16.cont [6/8] 0, 128
        %973 = vxpose.xlu0.c.b16.cont [7/8] 0, 128
        %974 = vxpose.xlu0.c.b16.end [8/8] 0, 128
        %v975 = vpop.trf.xlu0
        %v976 = vpop.trf.xlu0
        %v977 = vpop.trf.xlu0
        %v978 = vpop.trf.xlu0
        %v979 = vpop.trf.xlu0
        %v980 = vpop.trf.xlu0
        %v981 = vpop.trf.xlu0
        %v982 = vpop.trf.xlu0
        %983 = vxpose.xlu0.c.b16.start [1/8] %v605, 128
        %984 = vxpose.xlu0.c.b16.cont [2/8] 0, 128
        %985 = vxpose.xlu0.c.b16.cont [3/8] 0, 128
        %986 = vxpose.xlu0.c.b16.cont [4/8] 0, 128
        %987 = vxpose.xlu0.c.b16.cont [5/8] 0, 128
        %988 = vxpose.xlu0.c.b16.cont [6/8] 0, 128
        %989 = vxpose.xlu0.c.b16.cont [7/8] 0, 128
        %990 = vxpose.xlu0.c.b16.end [8/8] 0, 128
        %v991 = vpop.trf.xlu0
        %v992 = vpop.trf.xlu0
        %v993 = vpop.trf.xlu0
        %v994 = vpop.trf.xlu0
        %v995 = vpop.trf.xlu0
        %v996 = vpop.trf.xlu0
        %v997 = vpop.trf.xlu0
        %v998 = vpop.trf.xlu0
        %v1000 = vsel %vm718, %v975, 0
        %v1003 = vsel %vm718, %v976, 0
        %v1006 = vsel %vm718, %v977, 0
        %v1009 = vsel %vm718, %v978, 0
        %v1012 = vsel %vm718, %v979, 0
        %v1015 = vsel %vm718, %v980, 0
        %v1018 = vsel %vm718, %v981, 0
        %v1021 = vsel %vm718, %v982, 0
        %v1024 = vsel %vm718, %v991, 0
        %v1027 = vsel %vm718, %v992, 0
        %v1030 = vsel %vm718, %v993, 0
        %v1033 = vsel %vm718, %v994, 0
        %v1036 = vsel %vm718, %v995, 0
        %v1039 = vsel %vm718, %v996, 0
        %v1042 = vsel %vm718, %v997, 0
        %v1045 = vsel %vm718, %v998, 0
        %v1048 = vsel %vm767, %v602, 0
        %v1051 = vsel %vm767, %v603, 0
        %1053 = vmatprep.subr.bf16.mxu0 %v1051
        %1054 = vmatpush1.bf16.msra.mxu0 %v1048
        %1055 = vmatprep.subr.bf16.mxu0 0
        %1056 = vmatpush1.bf16.msra.mxu0 0
        %1057 = vmatprep.subr.bf16.mxu0 0
        %1058 = vmatpush1.bf16.msra.mxu0 0
        %1059 = vmatprep.subr.bf16.mxu0 0
        %1060 = vmatpush1.bf16.msra.mxu0 0
        %1061 = vmatprep.subr.bf16.mxu0 0
        %1062 = vmatpush1.bf16.msra.mxu0 0
        %1063 = vmatprep.subr.bf16.mxu0 0
        %1064 = vmatpush1.bf16.msra.mxu0 0
        %1065 = vmatprep.subr.bf16.mxu0 0
        %1066 = vmatpush1.bf16.msra.mxu0 0
        %1067 = vmatprep.subr.bf16.mxu0 0
        %1068 = vmatpush1.bf16.msra.mxu0 0
        %1069 = vmatprep.subr.bf16.mxu0 0
        %1070 = vmatpush1.bf16.msra.mxu0 0
        %1071 = vmatprep.subr.bf16.mxu0 0
        %1072 = vmatpush1.bf16.msra.mxu0 0
        %1073 = vmatprep.subr.bf16.mxu0 0
        %1074 = vmatpush1.bf16.msra.mxu0 0
        %1075 = vmatprep.subr.bf16.mxu0 0
        %1076 = vmatpush1.bf16.msra.mxu0 0
        %1077 = vmatprep.subr.bf16.mxu0 0
        %1078 = vmatpush1.bf16.msra.mxu0 0
        %1079 = vmatprep.subr.bf16.mxu0 0
        %1080 = vmatpush1.bf16.msra.mxu0 0
        %1081 = vmatprep.subr.bf16.mxu0 0
        %1082 = vmatpush1.bf16.msra.mxu0 0
        %1083 = vmatprep.subr.bf16.mxu0 0
        %1084 = vmatpush1.bf16.msra.mxu0 0
        %1085 = vmatprep.mubr.bf16.mxu0 0
        %1086 = vmatmul.mubr.bf16.gmra.mrb[0].mxu0 %v1000
        %v1087 = vpop.f32.mrb[0].mxu0
        %v1088 = vadd.f32 0.0, %v1087
        %v1089 = vpop.f32.mrb[0].mxu0
        %v1090 = vadd.f32 0.0, %v1089
        %v1091 = vpop.f32.mrb[0].mxu0
        %v1092 = vadd.f32 0.0, %v1091
        %v1093 = vpop.f32.mrb[0].mxu0
        %v1094 = vadd.f32 0.0, %v1093
        %1095 = vmatprep.mubr.bf16.mxu0 0
        %1096 = vmatmul.mubr.bf16.gmra.mrb[0].mxu0 %v1003
        %v1097 = vpop.f32.mrb[0].mxu0
        %v1098 = vadd.f32 0.0, %v1097
        %v1099 = vpop.f32.mrb[0].mxu0
        %v1100 = vadd.f32 0.0, %v1099
        %v1101 = vpop.f32.mrb[0].mxu0
        %v1102 = vadd.f32 0.0, %v1101
        %v1103 = vpop.f32.mrb[0].mxu0
        %v1104 = vadd.f32 0.0, %v1103
        %1105 = vmatprep.mubr.bf16.mxu0 0
        %1106 = vmatmul.mubr.bf16.gmra.mrb[0].mxu0 %v1006
        %v1107 = vpop.f32.mrb[0].mxu0
        %v1108 = vadd.f32 0.0, %v1107
        %v1109 = vpop.f32.mrb[0].mxu0
        %v1110 = vadd.f32 0.0, %v1109
        %v1111 = vpop.f32.mrb[0].mxu0
        %v1112 = vadd.f32 0.0, %v1111
        %v1113 = vpop.f32.mrb[0].mxu0
        %v1114 = vadd.f32 0.0, %v1113
        %1115 = vmatprep.mubr.bf16.mxu0 0
        %1116 = vmatmul.mubr.bf16.gmra.mrb[0].mxu0 %v1009
        %v1117 = vpop.f32.mrb[0].mxu0
        %v1118 = vadd.f32 0.0, %v1117
        %v1119 = vpop.f32.mrb[0].mxu0
        %v1120 = vadd.f32 0.0, %v1119
        %v1121 = vpop.f32.mrb[0].mxu0
        %v1122 = vadd.f32 0.0, %v1121
        %v1123 = vpop.f32.mrb[0].mxu0
        %v1124 = vadd.f32 0.0, %v1123
        %1125 = vmatprep.mubr.bf16.mxu0 0
        %1126 = vmatmul.mubr.bf16.gmra.mrb[0].mxu0 %v1012
        %v1127 = vpop.f32.mrb[0].mxu0
        %v1128 = vadd.f32 0.0, %v1127
        %v1129 = vpop.f32.mrb[0].mxu0
        %v1130 = vadd.f32 0.0, %v1129
        %v1131 = vpop.f32.mrb[0].mxu0
        %v1132 = vadd.f32 0.0, %v1131
        %v1133 = vpop.f32.mrb[0].mxu0
        %v1134 = vadd.f32 0.0, %v1133
        %1135 = vmatprep.mubr.bf16.mxu0 0
        %1136 = vmatmul.mubr.bf16.gmra.mrb[0].mxu0 %v1015
        %v1137 = vpop.f32.mrb[0].mxu0
        %v1138 = vadd.f32 0.0, %v1137
        %v1139 = vpop.f32.mrb[0].mxu0
        %v1140 = vadd.f32 0.0, %v1139
        %v1141 = vpop.f32.mrb[0].mxu0
        %v1142 = vadd.f32 0.0, %v1141
        %v1143 = vpop.f32.mrb[0].mxu0
        %v1144 = vadd.f32 0.0, %v1143
        %1145 = vmatprep.mubr.bf16.mxu0 0
        %1146 = vmatmul.mubr.bf16.gmra.mrb[0].mxu0 %v1018
        %v1147 = vpop.f32.mrb[0].mxu0
        %v1148 = vadd.f32 0.0, %v1147
        %v1149 = vpop.f32.mrb[0].mxu0
        %v1150 = vadd.f32 0.0, %v1149
        %v1151 = vpop.f32.mrb[0].mxu0
        %v1152 = vadd.f32 0.0, %v1151
        %v1153 = vpop.f32.mrb[0].mxu0
        %v1154 = vadd.f32 0.0, %v1153
        %1155 = vmatprep.mubr.bf16.mxu0 0
        %1156 = vmatmul.mubr.bf16.gmra.mrb[0].mxu0 %v1021
        %v1157 = vpop.f32.mrb[0].mxu0
        %v1158 = vadd.f32 0.0, %v1157
        %v1159 = vpop.f32.mrb[0].mxu0
        %v1160 = vadd.f32 0.0, %v1159
        %v1161 = vpop.f32.mrb[0].mxu0
        %v1162 = vadd.f32 0.0, %v1161
        %v1163 = vpop.f32.mrb[0].mxu0
        %v1164 = vadd.f32 0.0, %v1163
        %1165 = vmatprep.mubr.bf16.mxu0 0
        %1166 = vmatmul.mubr.bf16.gmra.mrb[0].mxu0 %v1024
        %v1167 = vpop.f32.mrb[0].mxu0
        %v1168 = vadd.f32 0.0, %v1167
        %v1169 = vpop.f32.mrb[0].mxu0
        %v1170 = vadd.f32 0.0, %v1169
        %v1171 = vpop.f32.mrb[0].mxu0
        %v1172 = vadd.f32 0.0, %v1171
        %v1173 = vpop.f32.mrb[0].mxu0
        %v1174 = vadd.f32 0.0, %v1173
        %1175 = vmatprep.mubr.bf16.mxu0 0
        %1176 = vmatmul.mubr.bf16.gmra.mrb[0].mxu0 %v1027
        %v1177 = vpop.f32.mrb[0].mxu0
        %v1178 = vadd.f32 0.0, %v1177
        %v1179 = vpop.f32.mrb[0].mxu0
        %v1180 = vadd.f32 0.0, %v1179
        %v1181 = vpop.f32.mrb[0].mxu0
        %v1182 = vadd.f32 0.0, %v1181
        %v1183 = vpop.f32.mrb[0].mxu0
        %v1184 = vadd.f32 0.0, %v1183
        %1185 = vmatprep.mubr.bf16.mxu0 0
        %1186 = vmatmul.mubr.bf16.gmra.mrb[0].mxu0 %v1030
        %v1187 = vpop.f32.mrb[0].mxu0
        %v1188 = vadd.f32 0.0, %v1187
        %v1189 = vpop.f32.mrb[0].mxu0
        %v1190 = vadd.f32 0.0, %v1189
        %v1191 = vpop.f32.mrb[0].mxu0
        %v1192 = vadd.f32 0.0, %v1191
        %v1193 = vpop.f32.mrb[0].mxu0
        %v1194 = vadd.f32 0.0, %v1193
        %1195 = vmatprep.mubr.bf16.mxu0 0
        %1196 = vmatmul.mubr.bf16.gmra.mrb[0].mxu0 %v1033
        %v1197 = vpop.f32.mrb[0].mxu0
        %v1198 = vadd.f32 0.0, %v1197
        %v1199 = vpop.f32.mrb[0].mxu0
        %v1200 = vadd.f32 0.0, %v1199
        %v1201 = vpop.f32.mrb[0].mxu0
        %v1202 = vadd.f32 0.0, %v1201
        %v1203 = vpop.f32.mrb[0].mxu0
        %v1204 = vadd.f32 0.0, %v1203
        %1205 = vmatprep.mubr.bf16.mxu0 0
        %1206 = vmatmul.mubr.bf16.gmra.mrb[0].mxu0 %v1036
        %v1207 = vpop.f32.mrb[0].mxu0
        %v1208 = vadd.f32 0.0, %v1207
        %v1209 = vpop.f32.mrb[0].mxu0
        %v1210 = vadd.f32 0.0, %v1209
        %v1211 = vpop.f32.mrb[0].mxu0
        %v1212 = vadd.f32 0.0, %v1211
        %v1213 = vpop.f32.mrb[0].mxu0
        %v1214 = vadd.f32 0.0, %v1213
        %1215 = vmatprep.mubr.bf16.mxu0 0
        %1216 = vmatmul.mubr.bf16.gmra.mrb[0].mxu0 %v1039
        %v1217 = vpop.f32.mrb[0].mxu0
        %v1218 = vadd.f32 0.0, %v1217
        %v1219 = vpop.f32.mrb[0].mxu0
        %v1220 = vadd.f32 0.0, %v1219
        %v1221 = vpop.f32.mrb[0].mxu0
        %v1222 = vadd.f32 0.0, %v1221
        %v1223 = vpop.f32.mrb[0].mxu0
        %v1224 = vadd.f32 0.0, %v1223
        %1225 = vmatprep.mubr.bf16.mxu0 0
        %1226 = vmatmul.mubr.bf16.gmra.mrb[0].mxu0 %v1042
        %v1227 = vpop.f32.mrb[0].mxu0
        %v1228 = vadd.f32 0.0, %v1227
        %v1229 = vpop.f32.mrb[0].mxu0
        %v1230 = vadd.f32 0.0, %v1229
        %v1231 = vpop.f32.mrb[0].mxu0
        %v1232 = vadd.f32 0.0, %v1231
        %v1233 = vpop.f32.mrb[0].mxu0
        %v1234 = vadd.f32 0.0, %v1233
        %1235 = vmatprep.mubr.bf16.mxu0 0
        %1236 = vmatmul.mubr.bf16.gmra.mrb[0].mxu0 %v1045
        %v1237 = vpop.f32.mrb[0].mxu0
        %v1238 = vadd.f32 0.0, %v1237
        %v1239 = vpop.f32.mrb[0].mxu0
        %v1240 = vadd.f32 0.0, %v1239
        %v1241 = vpop.f32.mrb[0].mxu0
        %v1242 = vadd.f32 0.0, %v1241
        %v1243 = vpop.f32.mrb[0].mxu0
        %v1244 = vadd.f32 0.0, %v1243
        %1245 = vdwg.mxu0
        %vm1246 = vcmask 27648
        %v1247 = vsel %vm1246, %v641, -inf
        %1248 = vmax.xlane.f32.xlu0 %v1247
        %v1249 = vpop.xlane.xlu0 %1248
        %v1250 = vsub.f32 %v641, %v1249
        %v1251 = vmul.f32 %v1250, 1.442695
        %v1252 = vpow.pop %v1251
        %v1253 = vsel %vm1246, %v1252, 0.0
        %1254 = vadd.xlane.f32.xlu0 %v1253
        %v1255 = vpop.xlane.xlu0 %1254
        %v1256 = vrcp.pop %v1255
        %v1257 = vmul.f32 %v1252, %v1256
        %v1258 = vpack.c.bf16 %v1257, %v1257
        %v1259 = vsel %vm1246, %v681, -inf
        %1260 = vmax.xlane.f32.xlu0 %v1259
        %v1261 = vpop.xlane.xlu0 %1260
        %v1262 = vsub.f32 %v681, %v1261
        %v1263 = vmul.f32 %v1262, 1.442695
        %v1264 = vpow.pop %v1263
        %v1265 = vsel %vm1246, %v1264, 0.0
        %1266 = vadd.xlane.f32.xlu0 %v1265
        %v1267 = vpop.xlane.xlu0 %1266
        %v1268 = vrcp.pop %v1267
        %v1269 = vmul.f32 %v1264, %v1268
        %v1270 = vpack.c.bf16 %v1269, %v1269
        %v1271 = vmax.f32 %v1088, %v1090
        %1272 = vmax.xlane.f32.xlu0 %v1271
        %v1273 = vpop.xlane.xlu0 %1272
        %v1274 = vmax.f32 %v1092, %v1094
        %1275 = vmax.xlane.f32.xlu0 %v1274
        %v1276 = vpop.xlane.xlu0 %1275
        %v1277 = vmax.f32 %v1098, %v1100
        %1278 = vmax.xlane.f32.xlu0 %v1277
        %v1279 = vpop.xlane.xlu0 %1278
        %v1280 = vmax.f32 %v1102, %v1104
        %1281 = vmax.xlane.f32.xlu0 %v1280
        %v1282 = vpop.xlane.xlu0 %1281
        %v1283 = vmax.f32 %v1108, %v1110
        %1284 = vmax.xlane.f32.xlu0 %v1283
        %v1285 = vpop.xlane.xlu0 %1284
        %v1286 = vmax.f32 %v1112, %v1114
        %1287 = vmax.xlane.f32.xlu0 %v1286
        %v1288 = vpop.xlane.xlu0 %1287
        %v1289 = vmax.f32 %v1118, %v1120
        %1290 = vmax.xlane.f32.xlu0 %v1289
        %v1291 = vpop.xlane.xlu0 %1290
        %v1292 = vmax.f32 %v1122, %v1124
        %1293 = vmax.xlane.f32.xlu0 %v1292
        %v1294 = vpop.xlane.xlu0 %1293
        %v1295 = vmax.f32 %v1128, %v1130
        %1296 = vmax.xlane.f32.xlu0 %v1295
        %v1297 = vpop.xlane.xlu0 %1296
        %v1298 = vmax.f32 %v1132, %v1134
        %1299 = vmax.xlane.f32.xlu0 %v1298
        %v1300 = vpop.xlane.xlu0 %1299
        %v1301 = vmax.f32 %v1138, %v1140
        %1302 = vmax.xlane.f32.xlu0 %v1301
        %v1303 = vpop.xlane.xlu0 %1302
        %v1304 = vmax.f32 %v1142, %v1144
        %1305 = vmax.xlane.f32.xlu0 %v1304
        %v1306 = vpop.xlane.xlu0 %1305
        %v1307 = vmax.f32 %v1148, %v1150
        %1308 = vmax.xlane.f32.xlu0 %v1307
        %v1309 = vpop.xlane.xlu0 %1308
        %v1310 = vmax.f32 %v1152, %v1154
        %1311 = vmax.xlane.f32.xlu0 %v1310
        %v1312 = vpop.xlane.xlu0 %1311
        %v1313 = vmax.f32 %v1158, %v1160
        %1314 = vmax.xlane.f32.xlu0 %v1313
        %v1315 = vpop.xlane.xlu0 %1314
        %v1316 = vmax.f32 %v1162, %v1164
        %1317 = vmax.xlane.f32.xlu0 %v1316
        %v1318 = vpop.xlane.xlu0 %1317
        %v1319 = vmax.f32 %v1168, %v1170
        %1320 = vmax.xlane.f32.xlu0 %v1319
        %v1321 = vpop.xlane.xlu0 %1320
        %v1322 = vmax.f32 %v1172, %v1174
        %1323 = vmax.xlane.f32.xlu0 %v1322
        %v1324 = vpop.xlane.xlu0 %1323
        %v1325 = vmax.f32 %v1178, %v1180
        %1326 = vmax.xlane.f32.xlu0 %v1325
        %v1327 = vpop.xlane.xlu0 %1326
        %v1328 = vmax.f32 %v1182, %v1184
        %1329 = vmax.xlane.f32.xlu0 %v1328
        %v1330 = vpop.xlane.xlu0 %1329
        %v1331 = vmax.f32 %v1188, %v1190
        %1332 = vmax.xlane.f32.xlu0 %v1331
        %v1333 = vpop.xlane.xlu0 %1332
        %v1334 = vmax.f32 %v1192, %v1194
        %1335 = vmax.xlane.f32.xlu0 %v1334
        %v1336 = vpop.xlane.xlu0 %1335
        %v1337 = vmax.f32 %v1198, %v1200
        %1338 = vmax.xlane.f32.xlu0 %v1337
        %v1339 = vpop.xlane.xlu0 %1338
        %v1340 = vmax.f32 %v1202, %v1204
        %1341 = vmax.xlane.f32.xlu0 %v1340
        %v1342 = vpop.xlane.xlu0 %1341
        %v1343 = vmax.f32 %v1208, %v1210
        %1344 = vmax.xlane.f32.xlu0 %v1343
        %v1345 = vpop.xlane.xlu0 %1344
        %v1346 = vmax.f32 %v1212, %v1214
        %1347 = vmax.xlane.f32.xlu0 %v1346
        %v1348 = vpop.xlane.xlu0 %1347
        %v1349 = vmax.f32 %v1218, %v1220
        %1350 = vmax.xlane.f32.xlu0 %v1349
        %v1351 = vpop.xlane.xlu0 %1350
        %v1352 = vmax.f32 %v1222, %v1224
        %1353 = vmax.xlane.f32.xlu0 %v1352
        %v1354 = vpop.xlane.xlu0 %1353
        %v1355 = vmax.f32 %v1228, %v1230
        %1356 = vmax.xlane.f32.xlu0 %v1355
        %v1357 = vpop.xlane.xlu0 %1356
        %v1358 = vmax.f32 %v1232, %v1234
        %1359 = vmax.xlane.f32.xlu0 %v1358
        %v1360 = vpop.xlane.xlu0 %1359
        %v1361 = vmax.f32 %v1238, %v1240
        %1362 = vmax.xlane.f32.xlu0 %v1361
        %v1363 = vpop.xlane.xlu0 %1362
        %v1364 = vmax.f32 %v1242, %v1244
        %1365 = vmax.xlane.f32.xlu0 %v1364
        %v1366 = vpop.xlane.xlu0 %1365
        %v1367 = vsub.f32 %v1088, %v1273
        %v1368 = vsub.f32 %v1090, %v1273
        %v1369 = vsub.f32 %v1092, %v1276
        %v1370 = vsub.f32 %v1094, %v1276
        %v1371 = vsub.f32 %v1098, %v1279
        %v1372 = vsub.f32 %v1100, %v1279
        %v1373 = vsub.f32 %v1102, %v1282
        %v1374 = vsub.f32 %v1104, %v1282
        %v1375 = vsub.f32 %v1108, %v1285
        %v1376 = vsub.f32 %v1110, %v1285
        %v1377 = vsub.f32 %v1112, %v1288
        %v1378 = vsub.f32 %v1114, %v1288
        %v1379 = vsub.f32 %v1118, %v1291
        %v1380 = vsub.f32 %v1120, %v1291
        %v1381 = vsub.f32 %v1122, %v1294
        %v1382 = vsub.f32 %v1124, %v1294
        %v1383 = vsub.f32 %v1128, %v1297
        %v1384 = vsub.f32 %v1130, %v1297
        %v1385 = vsub.f32 %v1132, %v1300
        %v1386 = vsub.f32 %v1134, %v1300
        %v1387 = vsub.f32 %v1138, %v1303
        %v1388 = vsub.f32 %v1140, %v1303
        %v1389 = vsub.f32 %v1142, %v1306
        %v1390 = vsub.f32 %v1144, %v1306
        %v1391 = vsub.f32 %v1148, %v1309
        %v1392 = vsub.f32 %v1150, %v1309
        %v1393 = vsub.f32 %v1152, %v1312
        %v1394 = vsub.f32 %v1154, %v1312
        %v1395 = vsub.f32 %v1158, %v1315
        %v1396 = vsub.f32 %v1160, %v1315
        %v1397 = vsub.f32 %v1162, %v1318
        %v1398 = vsub.f32 %v1164, %v1318
        %v1399 = vsub.f32 %v1168, %v1321
        %v1400 = vsub.f32 %v1170, %v1321
        %v1401 = vsub.f32 %v1172, %v1324
        %v1402 = vsub.f32 %v1174, %v1324
        %v1403 = vsub.f32 %v1178, %v1327
        %v1404 = vsub.f32 %v1180, %v1327
        %v1405 = vsub.f32 %v1182, %v1330
        %v1406 = vsub.f32 %v1184, %v1330
        %v1407 = vsub.f32 %v1188, %v1333
        %v1408 = vsub.f32 %v1190, %v1333
        %v1409 = vsub.f32 %v1192, %v1336
        %v1410 = vsub.f32 %v1194, %v1336
        %v1411 = vsub.f32 %v1198, %v1339
        %v1412 = vsub.f32 %v1200, %v1339
        %v1413 = vsub.f32 %v1202, %v1342
        %v1414 = vsub.f32 %v1204, %v1342
        %v1415 = vsub.f32 %v1208, %v1345
        %v1416 = vsub.f32 %v1210, %v1345
        %v1417 = vsub.f32 %v1212, %v1348
        %v1418 = vsub.f32 %v1214, %v1348
        %v1419 = vsub.f32 %v1218, %v1351
        %v1420 = vsub.f32 %v1220, %v1351
        %v1421 = vsub.f32 %v1222, %v1354
        %v1422 = vsub.f32 %v1224, %v1354
        %v1423 = vsub.f32 %v1228, %v1357
        %v1424 = vsub.f32 %v1230, %v1357
        %v1425 = vsub.f32 %v1232, %v1360
        %v1426 = vsub.f32 %v1234, %v1360
        %v1427 = vsub.f32 %v1238, %v1363
        %v1428 = vsub.f32 %v1240, %v1363
        %v1429 = vsub.f32 %v1242, %v1366
        %v1430 = vsub.f32 %v1244, %v1366
        %v1431 = vmul.f32 %v1367, 1.442695
        %v1432 = vpow.pop %v1431
        %v1433 = vmul.f32 %v1368, 1.442695
        %v1434 = vpow.pop %v1433
        %v1435 = vmul.f32 %v1369, 1.442695
        %v1436 = vpow.pop %v1435
        %v1437 = vmul.f32 %v1370, 1.442695
        %v1438 = vpow.pop %v1437
        %v1439 = vmul.f32 %v1371, 1.442695
        %v1440 = vpow.pop %v1439
        %v1441 = vmul.f32 %v1372, 1.442695
        %v1442 = vpow.pop %v1441
        %v1443 = vmul.f32 %v1373, 1.442695
        %v1444 = vpow.pop %v1443
        %v1445 = vmul.f32 %v1374, 1.442695
        %v1446 = vpow.pop %v1445
        %v1447 = vmul.f32 %v1375, 1.442695
        %v1448 = vpow.pop %v1447
        %v1449 = vmul.f32 %v1376, 1.442695
        %v1450 = vpow.pop %v1449
        %v1451 = vmul.f32 %v1377, 1.442695
        %v1452 = vpow.pop %v1451
        %v1453 = vmul.f32 %v1378, 1.442695
        %v1454 = vpow.pop %v1453
        %v1455 = vmul.f32 %v1379, 1.442695
        %v1456 = vpow.pop %v1455
        %v1457 = vmul.f32 %v1380, 1.442695
        %v1458 = vpow.pop %v1457
        %v1459 = vmul.f32 %v1381, 1.442695
        %v1460 = vpow.pop %v1459
        %v1461 = vmul.f32 %v1382, 1.442695
        %v1462 = vpow.pop %v1461
        %v1463 = vmul.f32 %v1383, 1.442695
        %v1464 = vpow.pop %v1463
        %v1465 = vmul.f32 %v1384, 1.442695
        %v1466 = vpow.pop %v1465
        %v1467 = vmul.f32 %v1385, 1.442695
        %v1468 = vpow.pop %v1467
        %v1469 = vmul.f32 %v1386, 1.442695
        %v1470 = vpow.pop %v1469
        %v1471 = vmul.f32 %v1387, 1.442695
        %v1472 = vpow.pop %v1471
        %v1473 = vmul.f32 %v1388, 1.442695
        %v1474 = vpow.pop %v1473
        %v1475 = vmul.f32 %v1389, 1.442695
        %v1476 = vpow.pop %v1475
        %v1477 = vmul.f32 %v1390, 1.442695
        %v1478 = vpow.pop %v1477
        %v1479 = vmul.f32 %v1391, 1.442695
        %v1480 = vpow.pop %v1479
        %v1481 = vmul.f32 %v1392, 1.442695
        %v1482 = vpow.pop %v1481
        %v1483 = vmul.f32 %v1393, 1.442695
        %v1484 = vpow.pop %v1483
        %v1485 = vmul.f32 %v1394, 1.442695
        %v1486 = vpow.pop %v1485
        %v1487 = vmul.f32 %v1395, 1.442695
        %v1488 = vpow.pop %v1487
        %v1489 = vmul.f32 %v1396, 1.442695
        %v1490 = vpow.pop %v1489
        %v1491 = vmul.f32 %v1397, 1.442695
        %v1492 = vpow.pop %v1491
        %v1493 = vmul.f32 %v1398, 1.442695
        %v1494 = vpow.pop %v1493
        %v1495 = vmul.f32 %v1399, 1.442695
        %v1496 = vpow.pop %v1495
        %v1497 = vmul.f32 %v1400, 1.442695
        %v1498 = vpow.pop %v1497
        %v1499 = vmul.f32 %v1401, 1.442695
        %v1500 = vpow.pop %v1499
        %v1501 = vmul.f32 %v1402, 1.442695
        %v1502 = vpow.pop %v1501
        %v1503 = vmul.f32 %v1403, 1.442695
        %v1504 = vpow.pop %v1503
        %v1505 = vmul.f32 %v1404, 1.442695
        %v1506 = vpow.pop %v1505
        %v1507 = vmul.f32 %v1405, 1.442695
        %v1508 = vpow.pop %v1507
        %v1509 = vmul.f32 %v1406, 1.442695
        %v1510 = vpow.pop %v1509
        %v1511 = vmul.f32 %v1407, 1.442695
        %v1512 = vpow.pop %v1511
        %v1513 = vmul.f32 %v1408, 1.442695
        %v1514 = vpow.pop %v1513
        %v1515 = vmul.f32 %v1409, 1.442695
        %v1516 = vpow.pop %v1515
        %v1517 = vmul.f32 %v1410, 1.442695
        %v1518 = vpow.pop %v1517
        %v1519 = vmul.f32 %v1411, 1.442695
        %v1520 = vpow.pop %v1519
        %v1521 = vmul.f32 %v1412, 1.442695
        %v1522 = vpow.pop %v1521
        %v1523 = vmul.f32 %v1413, 1.442695
        %v1524 = vpow.pop %v1523
        %v1525 = vmul.f32 %v1414, 1.442695
        %v1526 = vpow.pop %v1525
        %v1527 = vmul.f32 %v1415, 1.442695
        %v1528 = vpow.pop %v1527
        %v1529 = vmul.f32 %v1416, 1.442695
        %v1530 = vpow.pop %v1529
        %v1531 = vmul.f32 %v1417, 1.442695
        %v1532 = vpow.pop %v1531
        %v1533 = vmul.f32 %v1418, 1.442695
        %v1534 = vpow.pop %v1533
        %v1535 = vmul.f32 %v1419, 1.442695
        %v1536 = vpow.pop %v1535
        %v1537 = vmul.f32 %v1420, 1.442695
        %v1538 = vpow.pop %v1537
        %v1539 = vmul.f32 %v1421, 1.442695
        %v1540 = vpow.pop %v1539
        %v1541 = vmul.f32 %v1422, 1.442695
        %v1542 = vpow.pop %v1541
        %v1543 = vmul.f32 %v1423, 1.442695
        %v1544 = vpow.pop %v1543
        %v1545 = vmul.f32 %v1424, 1.442695
        %v1546 = vpow.pop %v1545
        %v1547 = vmul.f32 %v1425, 1.442695
        %v1548 = vpow.pop %v1547
        %v1549 = vmul.f32 %v1426, 1.442695
        %v1550 = vpow.pop %v1549
        %v1551 = vmul.f32 %v1427, 1.442695
        %v1552 = vpow.pop %v1551
        %v1553 = vmul.f32 %v1428, 1.442695
        %v1554 = vpow.pop %v1553
        %v1555 = vmul.f32 %v1429, 1.442695
        %v1556 = vpow.pop %v1555
        %v1557 = vmul.f32 %v1430, 1.442695
        %v1558 = vpow.pop %v1557
        %v1559 = vadd.f32 %v1432, %v1434
        %1560 = vadd.xlane.f32.xlu0 %v1559
        %v1561 = vpop.xlane.xlu0 %1560
        %v1562 = vadd.f32 %v1436, %v1438
        %1563 = vadd.xlane.f32.xlu0 %v1562
        %v1564 = vpop.xlane.xlu0 %1563
        %v1565 = vadd.f32 %v1440, %v1442
        %1566 = vadd.xlane.f32.xlu0 %v1565
        %v1567 = vpop.xlane.xlu0 %1566
        %v1568 = vadd.f32 %v1444, %v1446
        %1569 = vadd.xlane.f32.xlu0 %v1568
        %v1570 = vpop.xlane.xlu0 %1569
        %v1571 = vadd.f32 %v1448, %v1450
        %1572 = vadd.xlane.f32.xlu0 %v1571
        %v1573 = vpop.xlane.xlu0 %1572
        %v1574 = vadd.f32 %v1452, %v1454
        %1575 = vadd.xlane.f32.xlu0 %v1574
        %v1576 = vpop.xlane.xlu0 %1575
        %v1577 = vadd.f32 %v1456, %v1458
        %1578 = vadd.xlane.f32.xlu0 %v1577
        %v1579 = vpop.xlane.xlu0 %1578
        %v1580 = vadd.f32 %v1460, %v1462
        %1581 = vadd.xlane.f32.xlu0 %v1580
        %v1582 = vpop.xlane.xlu0 %1581
        %v1583 = vadd.f32 %v1464, %v1466
        %1584 = vadd.xlane.f32.xlu0 %v1583
        %v1585 = vpop.xlane.xlu0 %1584
        %v1586 = vadd.f32 %v1468, %v1470
        %1587 = vadd.xlane.f32.xlu0 %v1586
        %v1588 = vpop.xlane.xlu0 %1587
        %v1589 = vadd.f32 %v1472, %v1474
        %1590 = vadd.xlane.f32.xlu0 %v1589
        %v1591 = vpop.xlane.xlu0 %1590
        %v1592 = vadd.f32 %v1476, %v1478
        %1593 = vadd.xlane.f32.xlu0 %v1592
        %v1594 = vpop.xlane.xlu0 %1593
        %v1595 = vadd.f32 %v1480, %v1482
        %1596 = vadd.xlane.f32.xlu0 %v1595
        %v1597 = vpop.xlane.xlu0 %1596
        %v1598 = vadd.f32 %v1484, %v1486
        %1599 = vadd.xlane.f32.xlu0 %v1598
        %v1600 = vpop.xlane.xlu0 %1599
        %v1601 = vadd.f32 %v1488, %v1490
        %1602 = vadd.xlane.f32.xlu0 %v1601
        %v1603 = vpop.xlane.xlu0 %1602
        %v1604 = vadd.f32 %v1492, %v1494
        %1605 = vadd.xlane.f32.xlu0 %v1604
        %v1606 = vpop.xlane.xlu0 %1605
        %v1607 = vadd.f32 %v1496, %v1498
        %1608 = vadd.xlane.f32.xlu0 %v1607
        %v1609 = vpop.xlane.xlu0 %1608
        %v1610 = vadd.f32 %v1500, %v1502
        %1611 = vadd.xlane.f32.xlu0 %v1610
        %v1612 = vpop.xlane.xlu0 %1611
        %v1613 = vadd.f32 %v1504, %v1506
        %1614 = vadd.xlane.f32.xlu0 %v1613
        %v1615 = vpop.xlane.xlu0 %1614
        %v1616 = vadd.f32 %v1508, %v1510
        %1617 = vadd.xlane.f32.xlu0 %v1616
        %v1618 = vpop.xlane.xlu0 %1617
        %v1619 = vadd.f32 %v1512, %v1514
        %1620 = vadd.xlane.f32.xlu0 %v1619
        %v1621 = vpop.xlane.xlu0 %1620
        %v1622 = vadd.f32 %v1516, %v1518
        %1623 = vadd.xlane.f32.xlu0 %v1622
        %v1624 = vpop.xlane.xlu0 %1623
        %v1625 = vadd.f32 %v1520, %v1522
        %1626 = vadd.xlane.f32.xlu0 %v1625
        %v1627 = vpop.xlane.xlu0 %1626
        %v1628 = vadd.f32 %v1524, %v1526
        %1629 = vadd.xlane.f32.xlu0 %v1628
        %v1630 = vpop.xlane.xlu0 %1629
        %v1631 = vadd.f32 %v1528, %v1530
        %1632 = vadd.xlane.f32.xlu0 %v1631
        %v1633 = vpop.xlane.xlu0 %1632
        %v1634 = vadd.f32 %v1532, %v1534
        %1635 = vadd.xlane.f32.xlu0 %v1634
        %v1636 = vpop.xlane.xlu0 %1635
        %v1637 = vadd.f32 %v1536, %v1538
        %1638 = vadd.xlane.f32.xlu0 %v1637
        %v1639 = vpop.xlane.xlu0 %1638
        %v1640 = vadd.f32 %v1540, %v1542
        %1641 = vadd.xlane.f32.xlu0 %v1640
        %v1642 = vpop.xlane.xlu0 %1641
        %v1643 = vadd.f32 %v1544, %v1546
        %1644 = vadd.xlane.f32.xlu0 %v1643
        %v1645 = vpop.xlane.xlu0 %1644
        %v1646 = vadd.f32 %v1548, %v1550
        %1647 = vadd.xlane.f32.xlu0 %v1646
        %v1648 = vpop.xlane.xlu0 %1647
        %v1649 = vadd.f32 %v1552, %v1554
        %1650 = vadd.xlane.f32.xlu0 %v1649
        %v1651 = vpop.xlane.xlu0 %1650
        %v1652 = vadd.f32 %v1556, %v1558
        %1653 = vadd.xlane.f32.xlu0 %v1652
        %v1654 = vpop.xlane.xlu0 %1653
        %v1655 = vrcp.pop %v1561
        %v1656 = vrcp.pop %v1564
        %v1657 = vrcp.pop %v1567
        %v1658 = vrcp.pop %v1570
        %v1659 = vrcp.pop %v1573
        %v1660 = vrcp.pop %v1576
        %v1661 = vrcp.pop %v1579
        %v1662 = vrcp.pop %v1582
        %v1663 = vrcp.pop %v1585
        %v1664 = vrcp.pop %v1588
        %v1665 = vrcp.pop %v1591
        %v1666 = vrcp.pop %v1594
        %v1667 = vrcp.pop %v1597
        %v1668 = vrcp.pop %v1600
        %v1669 = vrcp.pop %v1603
        %v1670 = vrcp.pop %v1606
        %v1671 = vrcp.pop %v1609
        %v1672 = vrcp.pop %v1612
        %v1673 = vrcp.pop %v1615
        %v1674 = vrcp.pop %v1618
        %v1675 = vrcp.pop %v1621
        %v1676 = vrcp.pop %v1624
        %v1677 = vrcp.pop %v1627
        %v1678 = vrcp.pop %v1630
        %v1679 = vrcp.pop %v1633
        %v1680 = vrcp.pop %v1636
        %v1681 = vrcp.pop %v1639
        %v1682 = vrcp.pop %v1642
        %v1683 = vrcp.pop %v1645
        %v1684 = vrcp.pop %v1648
        %v1685 = vrcp.pop %v1651
        %v1686 = vrcp.pop %v1654
        %v1687 = vmul.f32 %v1432, %v1655
        %v1688 = vmul.f32 %v1434, %v1655
        %v1689 = vmul.f32 %v1436, %v1656
        %v1690 = vmul.f32 %v1438, %v1656
        %v1691 = vmul.f32 %v1440, %v1657
        %v1692 = vmul.f32 %v1442, %v1657
        %v1693 = vmul.f32 %v1444, %v1658
        %v1694 = vmul.f32 %v1446, %v1658
        %v1695 = vmul.f32 %v1448, %v1659
        %v1696 = vmul.f32 %v1450, %v1659
        %v1697 = vmul.f32 %v1452, %v1660
        %v1698 = vmul.f32 %v1454, %v1660
        %v1699 = vmul.f32 %v1456, %v1661
        %v1700 = vmul.f32 %v1458, %v1661
        %v1701 = vmul.f32 %v1460, %v1662
        %v1702 = vmul.f32 %v1462, %v1662
        %v1703 = vmul.f32 %v1464, %v1663
        %v1704 = vmul.f32 %v1466, %v1663
        %v1705 = vmul.f32 %v1468, %v1664
        %v1706 = vmul.f32 %v1470, %v1664
        %v1707 = vmul.f32 %v1472, %v1665
        %v1708 = vmul.f32 %v1474, %v1665
        %v1709 = vmul.f32 %v1476, %v1666
        %v1710 = vmul.f32 %v1478, %v1666
        %v1711 = vmul.f32 %v1480, %v1667
        %v1712 = vmul.f32 %v1482, %v1667
        %v1713 = vmul.f32 %v1484, %v1668
        %v1714 = vmul.f32 %v1486, %v1668
        %v1715 = vmul.f32 %v1488, %v1669
        %v1716 = vmul.f32 %v1490, %v1669
        %v1717 = vmul.f32 %v1492, %v1670
        %v1718 = vmul.f32 %v1494, %v1670
        %v1719 = vmul.f32 %v1496, %v1671
        %v1720 = vmul.f32 %v1498, %v1671
        %v1721 = vmul.f32 %v1500, %v1672
        %v1722 = vmul.f32 %v1502, %v1672
        %v1723 = vmul.f32 %v1504, %v1673
        %v1724 = vmul.f32 %v1506, %v1673
        %v1725 = vmul.f32 %v1508, %v1674
        %v1726 = vmul.f32 %v1510, %v1674
        %v1727 = vmul.f32 %v1512, %v1675
        %v1728 = vmul.f32 %v1514, %v1675
        %v1729 = vmul.f32 %v1516, %v1676
        %v1730 = vmul.f32 %v1518, %v1676
        %v1731 = vmul.f32 %v1520, %v1677
        %v1732 = vmul.f32 %v1522, %v1677
        %v1733 = vmul.f32 %v1524, %v1678
        %v1734 = vmul.f32 %v1526, %v1678
        %v1735 = vmul.f32 %v1528, %v1679
        %v1736 = vmul.f32 %v1530, %v1679
        %v1737 = vmul.f32 %v1532, %v1680
        %v1738 = vmul.f32 %v1534, %v1680
        %v1739 = vmul.f32 %v1536, %v1681
        %v1740 = vmul.f32 %v1538, %v1681
        %v1741 = vmul.f32 %v1540, %v1682
        %v1742 = vmul.f32 %v1542, %v1682
        %v1743 = vmul.f32 %v1544, %v1683
        %v1744 = vmul.f32 %v1546, %v1683
        %v1745 = vmul.f32 %v1548, %v1684
        %v1746 = vmul.f32 %v1550, %v1684
        %v1747 = vmul.f32 %v1552, %v1685
        %v1748 = vmul.f32 %v1554, %v1685
        %v1749 = vmul.f32 %v1556, %v1686
        %v1750 = vmul.f32 %v1558, %v1686
        %v1751 = vpack.c.bf16 %v1689, %v1687
        %v1752 = vpack.c.bf16 %v1690, %v1688
        %v1753 = vpack.c.bf16 %v1693, %v1691
        %v1754 = vpack.c.bf16 %v1694, %v1692
        %v1755 = vpack.c.bf16 %v1697, %v1695
        %v1756 = vpack.c.bf16 %v1698, %v1696
        %v1757 = vpack.c.bf16 %v1701, %v1699
        %v1758 = vpack.c.bf16 %v1702, %v1700
        %v1759 = vpack.c.bf16 %v1705, %v1703
        %v1760 = vpack.c.bf16 %v1706, %v1704
        %v1761 = vpack.c.bf16 %v1709, %v1707
        %v1762 = vpack.c.bf16 %v1710, %v1708
        %v1763 = vpack.c.bf16 %v1713, %v1711
        %v1764 = vpack.c.bf16 %v1714, %v1712
        %v1765 = vpack.c.bf16 %v1717, %v1715
        %v1766 = vpack.c.bf16 %v1718, %v1716
        %v1767 = vpack.c.bf16 %v1721, %v1719
        %v1768 = vpack.c.bf16 %v1722, %v1720
        %v1769 = vpack.c.bf16 %v1725, %v1723
        %v1770 = vpack.c.bf16 %v1726, %v1724
        %v1771 = vpack.c.bf16 %v1729, %v1727
        %v1772 = vpack.c.bf16 %v1730, %v1728
        %v1773 = vpack.c.bf16 %v1733, %v1731
        %v1774 = vpack.c.bf16 %v1734, %v1732
        %v1775 = vpack.c.bf16 %v1737, %v1735
        %v1776 = vpack.c.bf16 %v1738, %v1736
        %v1777 = vpack.c.bf16 %v1741, %v1739
        %v1778 = vpack.c.bf16 %v1742, %v1740
        %v1779 = vpack.c.bf16 %v1745, %v1743
        %v1780 = vpack.c.bf16 %v1746, %v1744
        %v1781 = vpack.c.bf16 %v1749, %v1747
        %v1782 = vpack.c.bf16 %v1750, %v1748
        %v1783 = vmax.f32 %v809, %v811
        %1784 = vmax.xlane.f32.xlu0 %v1783
        %v1785 = vpop.xlane.xlu0 %1784
        %v1786 = vmax.f32 %v813, %v815
        %1787 = vmax.xlane.f32.xlu0 %v1786
        %v1788 = vpop.xlane.xlu0 %1787
        %v1789 = vmax.f32 %v819, %v821
        %1790 = vmax.xlane.f32.xlu0 %v1789
        %v1791 = vpop.xlane.xlu0 %1790
        %v1792 = vmax.f32 %v823, %v825
        %1793 = vmax.xlane.f32.xlu0 %v1792
        %v1794 = vpop.xlane.xlu0 %1793
        %v1795 = vmax.f32 %v829, %v831
        %1796 = vmax.xlane.f32.xlu0 %v1795
        %v1797 = vpop.xlane.xlu0 %1796
        %v1798 = vmax.f32 %v833, %v835
        %1799 = vmax.xlane.f32.xlu0 %v1798
        %v1800 = vpop.xlane.xlu0 %1799
        %v1801 = vmax.f32 %v839, %v841
        %1802 = vmax.xlane.f32.xlu0 %v1801
        %v1803 = vpop.xlane.xlu0 %1802
        %v1804 = vmax.f32 %v843, %v845
        %1805 = vmax.xlane.f32.xlu0 %v1804
        %v1806 = vpop.xlane.xlu0 %1805
        %v1807 = vmax.f32 %v849, %v851
        %1808 = vmax.xlane.f32.xlu0 %v1807
        %v1809 = vpop.xlane.xlu0 %1808
        %v1810 = vmax.f32 %v853, %v855
        %1811 = vmax.xlane.f32.xlu0 %v1810
        %v1812 = vpop.xlane.xlu0 %1811
        %v1813 = vmax.f32 %v859, %v861
        %1814 = vmax.xlane.f32.xlu0 %v1813
        %v1815 = vpop.xlane.xlu0 %1814
        %v1816 = vmax.f32 %v863, %v865
        %1817 = vmax.xlane.f32.xlu0 %v1816
        %v1818 = vpop.xlane.xlu0 %1817
        %v1819 = vmax.f32 %v869, %v871
        %1820 = vmax.xlane.f32.xlu0 %v1819
        %v1821 = vpop.xlane.xlu0 %1820
        %v1822 = vmax.f32 %v873, %v875
        %1823 = vmax.xlane.f32.xlu0 %v1822
        %v1824 = vpop.xlane.xlu0 %1823
        %v1825 = vmax.f32 %v879, %v881
        %1826 = vmax.xlane.f32.xlu0 %v1825
        %v1827 = vpop.xlane.xlu0 %1826
        %v1828 = vmax.f32 %v883, %v885
        %1829 = vmax.xlane.f32.xlu0 %v1828
        %v1830 = vpop.xlane.xlu0 %1829
        %v1831 = vmax.f32 %v889, %v891
        %1832 = vmax.xlane.f32.xlu0 %v1831
        %v1833 = vpop.xlane.xlu0 %1832
        %v1834 = vmax.f32 %v893, %v895
        %1835 = vmax.xlane.f32.xlu0 %v1834
        %v1836 = vpop.xlane.xlu0 %1835
        %v1837 = vmax.f32 %v899, %v901
        %1838 = vmax.xlane.f32.xlu0 %v1837
        %v1839 = vpop.xlane.xlu0 %1838
        %v1840 = vmax.f32 %v903, %v905
        %1841 = vmax.xlane.f32.xlu0 %v1840
        %v1842 = vpop.xlane.xlu0 %1841
        %v1843 = vmax.f32 %v909, %v911
        %1844 = vmax.xlane.f32.xlu0 %v1843
        %v1845 = vpop.xlane.xlu0 %1844
        %v1846 = vmax.f32 %v913, %v915
        %1847 = vmax.xlane.f32.xlu0 %v1846
        %v1848 = vpop.xlane.xlu0 %1847
        %v1849 = vmax.f32 %v919, %v921
        %1850 = vmax.xlane.f32.xlu0 %v1849
        %v1851 = vpop.xlane.xlu0 %1850
        %v1852 = vmax.f32 %v923, %v925
        %1853 = vmax.xlane.f32.xlu0 %v1852
        %v1854 = vpop.xlane.xlu0 %1853
        %v1855 = vmax.f32 %v929, %v931
        %1856 = vmax.xlane.f32.xlu0 %v1855
        %v1857 = vpop.xlane.xlu0 %1856
        %v1858 = vmax.f32 %v933, %v935
        %1859 = vmax.xlane.f32.xlu0 %v1858
        %v1860 = vpop.xlane.xlu0 %1859
        %v1861 = vmax.f32 %v939, %v941
        %1862 = vmax.xlane.f32.xlu0 %v1861
        %v1863 = vpop.xlane.xlu0 %1862
        %v1864 = vmax.f32 %v943, %v945
        %1865 = vmax.xlane.f32.xlu0 %v1864
        %v1866 = vpop.xlane.xlu0 %1865
        %v1867 = vmax.f32 %v949, %v951
        %1868 = vmax.xlane.f32.xlu0 %v1867
        %v1869 = vpop.xlane.xlu0 %1868
        %v1870 = vmax.f32 %v953, %v955
        %1871 = vmax.xlane.f32.xlu0 %v1870
        %v1872 = vpop.xlane.xlu0 %1871
        %v1873 = vmax.f32 %v959, %v961
        %1874 = vmax.xlane.f32.xlu0 %v1873
        %v1875 = vpop.xlane.xlu0 %1874
        %v1876 = vmax.f32 %v963, %v965
        %1877 = vmax.xlane.f32.xlu0 %v1876
        %v1878 = vpop.xlane.xlu0 %1877
        %v1879 = vsub.f32 %v809, %v1785
        %v1880 = vsub.f32 %v811, %v1785
        %v1881 = vsub.f32 %v813, %v1788
        %v1882 = vsub.f32 %v815, %v1788
        %v1883 = vsub.f32 %v819, %v1791
        %v1884 = vsub.f32 %v821, %v1791
        %v1885 = vsub.f32 %v823, %v1794
        %v1886 = vsub.f32 %v825, %v1794
        %v1887 = vsub.f32 %v829, %v1797
        %v1888 = vsub.f32 %v831, %v1797
        %v1889 = vsub.f32 %v833, %v1800
        %v1890 = vsub.f32 %v835, %v1800
        %v1891 = vsub.f32 %v839, %v1803
        %v1892 = vsub.f32 %v841, %v1803
        %v1893 = vsub.f32 %v843, %v1806
        %v1894 = vsub.f32 %v845, %v1806
        %v1895 = vsub.f32 %v849, %v1809
        %v1896 = vsub.f32 %v851, %v1809
        %v1897 = vsub.f32 %v853, %v1812
        %v1898 = vsub.f32 %v855, %v1812
        %v1899 = vsub.f32 %v859, %v1815
        %v1900 = vsub.f32 %v861, %v1815
        %v1901 = vsub.f32 %v863, %v1818
        %v1902 = vsub.f32 %v865, %v1818
        %v1903 = vsub.f32 %v869, %v1821
        %v1904 = vsub.f32 %v871, %v1821
        %v1905 = vsub.f32 %v873, %v1824
        %v1906 = vsub.f32 %v875, %v1824
        %v1907 = vsub.f32 %v879, %v1827
        %v1908 = vsub.f32 %v881, %v1827
        %v1909 = vsub.f32 %v883, %v1830
        %v1910 = vsub.f32 %v885, %v1830
        %v1911 = vsub.f32 %v889, %v1833
        %v1912 = vsub.f32 %v891, %v1833
        %v1913 = vsub.f32 %v893, %v1836
        %v1914 = vsub.f32 %v895, %v1836
        %v1915 = vsub.f32 %v899, %v1839
        %v1916 = vsub.f32 %v901, %v1839
        %v1917 = vsub.f32 %v903, %v1842
        %v1918 = vsub.f32 %v905, %v1842
        %v1919 = vsub.f32 %v909, %v1845
        %v1920 = vsub.f32 %v911, %v1845
        %v1921 = vsub.f32 %v913, %v1848
        %v1922 = vsub.f32 %v915, %v1848
        %v1923 = vsub.f32 %v919, %v1851
        %v1924 = vsub.f32 %v921, %v1851
        %v1925 = vsub.f32 %v923, %v1854
        %v1926 = vsub.f32 %v925, %v1854
        %v1927 = vsub.f32 %v929, %v1857
        %v1928 = vsub.f32 %v931, %v1857
        %v1929 = vsub.f32 %v933, %v1860
        %v1930 = vsub.f32 %v935, %v1860
        %v1931 = vsub.f32 %v939, %v1863
        %v1932 = vsub.f32 %v941, %v1863
        %v1933 = vsub.f32 %v943, %v1866
        %v1934 = vsub.f32 %v945, %v1866
        %v1935 = vsub.f32 %v949, %v1869
        %v1936 = vsub.f32 %v951, %v1869
        %v1937 = vsub.f32 %v953, %v1872
        %v1938 = vsub.f32 %v955, %v1872
        %v1939 = vsub.f32 %v959, %v1875
        %v1940 = vsub.f32 %v961, %v1875
        %v1941 = vsub.f32 %v963, %v1878
        %v1942 = vsub.f32 %v965, %v1878
        %v1943 = vmul.f32 %v1879, 1.442695
        %v1944 = vpow.pop %v1943
        %v1945 = vmul.f32 %v1880, 1.442695
        %v1946 = vpow.pop %v1945
        %v1947 = vmul.f32 %v1881, 1.442695
        %v1948 = vpow.pop %v1947
        %v1949 = vmul.f32 %v1882, 1.442695
        %v1950 = vpow.pop %v1949
        %v1951 = vmul.f32 %v1883, 1.442695
        %v1952 = vpow.pop %v1951
        %v1953 = vmul.f32 %v1884, 1.442695
        %v1954 = vpow.pop %v1953
        %v1955 = vmul.f32 %v1885, 1.442695
        %v1956 = vpow.pop %v1955
        %v1957 = vmul.f32 %v1886, 1.442695
        %v1958 = vpow.pop %v1957
        %v1959 = vmul.f32 %v1887, 1.442695
        %v1960 = vpow.pop %v1959
        %v1961 = vmul.f32 %v1888, 1.442695
        %v1962 = vpow.pop %v1961
        %v1963 = vmul.f32 %v1889, 1.442695
        %v1964 = vpow.pop %v1963
        %v1965 = vmul.f32 %v1890, 1.442695
        %v1966 = vpow.pop %v1965
        %v1967 = vmul.f32 %v1891, 1.442695
        %v1968 = vpow.pop %v1967
        %v1969 = vmul.f32 %v1892, 1.442695
        %v1970 = vpow.pop %v1969
        %v1971 = vmul.f32 %v1893, 1.442695
        %v1972 = vpow.pop %v1971
        %v1973 = vmul.f32 %v1894, 1.442695
        %v1974 = vpow.pop %v1973
        %v1975 = vmul.f32 %v1895, 1.442695
        %v1976 = vpow.pop %v1975
        %v1977 = vmul.f32 %v1896, 1.442695
        %v1978 = vpow.pop %v1977
        %v1979 = vmul.f32 %v1897, 1.442695
        %v1980 = vpow.pop %v1979
        %v1981 = vmul.f32 %v1898, 1.442695
        %v1982 = vpow.pop %v1981
        %v1983 = vmul.f32 %v1899, 1.442695
        %v1984 = vpow.pop %v1983
        %v1985 = vmul.f32 %v1900, 1.442695
        %v1986 = vpow.pop %v1985
        %v1987 = vmul.f32 %v1901, 1.442695
        %v1988 = vpow.pop %v1987
        %v1989 = vmul.f32 %v1902, 1.442695
        %v1990 = vpow.pop %v1989
        %v1991 = vmul.f32 %v1903, 1.442695
        %v1992 = vpow.pop %v1991
        %v1993 = vmul.f32 %v1904, 1.442695
        %v1994 = vpow.pop %v1993
        %v1995 = vmul.f32 %v1905, 1.442695
        %v1996 = vpow.pop %v1995
        %v1997 = vmul.f32 %v1906, 1.442695
        %v1998 = vpow.pop %v1997
        %v1999 = vmul.f32 %v1907, 1.442695
        %v2000 = vpow.pop %v1999
        %v2001 = vmul.f32 %v1908, 1.442695
        %v2002 = vpow.pop %v2001
        %v2003 = vmul.f32 %v1909, 1.442695
        %v2004 = vpow.pop %v2003
        %v2005 = vmul.f32 %v1910, 1.442695
        %v2006 = vpow.pop %v2005
        %v2007 = vmul.f32 %v1911, 1.442695
        %v2008 = vpow.pop %v2007
        %v2009 = vmul.f32 %v1912, 1.442695
        %v2010 = vpow.pop %v2009
        %v2011 = vmul.f32 %v1913, 1.442695
        %v2012 = vpow.pop %v2011
        %v2013 = vmul.f32 %v1914, 1.442695
        %v2014 = vpow.pop %v2013
        %v2015 = vmul.f32 %v1915, 1.442695
        %v2016 = vpow.pop %v2015
        %v2017 = vmul.f32 %v1916, 1.442695
        %v2018 = vpow.pop %v2017
        %v2019 = vmul.f32 %v1917, 1.442695
        %v2020 = vpow.pop %v2019
        %v2021 = vmul.f32 %v1918, 1.442695
        %v2022 = vpow.pop %v2021
        %v2023 = vmul.f32 %v1919, 1.442695
        %v2024 = vpow.pop %v2023
        %v2025 = vmul.f32 %v1920, 1.442695
        %v2026 = vpow.pop %v2025
        %v2027 = vmul.f32 %v1921, 1.442695
        %v2028 = vpow.pop %v2027
        %v2029 = vmul.f32 %v1922, 1.442695
        %v2030 = vpow.pop %v2029
        %v2031 = vmul.f32 %v1923, 1.442695
        %v2032 = vpow.pop %v2031
        %v2033 = vmul.f32 %v1924, 1.442695
        %v2034 = vpow.pop %v2033
        %v2035 = vmul.f32 %v1925, 1.442695
        %v2036 = vpow.pop %v2035
        %v2037 = vmul.f32 %v1926, 1.442695
        %v2038 = vpow.pop %v2037
        %v2039 = vmul.f32 %v1927, 1.442695
        %v2040 = vpow.pop %v2039
        %v2041 = vmul.f32 %v1928, 1.442695
        %v2042 = vpow.pop %v2041
        %v2043 = vmul.f32 %v1929, 1.442695
        %v2044 = vpow.pop %v2043
        %v2045 = vmul.f32 %v1930, 1.442695
        %v2046 = vpow.pop %v2045
        %v2047 = vmul.f32 %v1931, 1.442695
        %v2048 = vpow.pop %v2047
        %v2049 = vmul.f32 %v1932, 1.442695
        %v2050 = vpow.pop %v2049
        %v2051 = vmul.f32 %v1933, 1.442695
        %v2052 = vpow.pop %v2051
        %v2053 = vmul.f32 %v1934, 1.442695
        %v2054 = vpow.pop %v2053
        %v2055 = vmul.f32 %v1935, 1.442695
        %v2056 = vpow.pop %v2055
        %v2057 = vmul.f32 %v1936, 1.442695
        %v2058 = vpow.pop %v2057
        %v2059 = vmul.f32 %v1937, 1.442695
        %v2060 = vpow.pop %v2059
        %v2061 = vmul.f32 %v1938, 1.442695
        %v2062 = vpow.pop %v2061
        %v2063 = vmul.f32 %v1939, 1.442695
        %v2064 = vpow.pop %v2063
        %v2065 = vmul.f32 %v1940, 1.442695
        %v2066 = vpow.pop %v2065
        %v2067 = vmul.f32 %v1941, 1.442695
        %v2068 = vpow.pop %v2067
        %v2069 = vmul.f32 %v1942, 1.442695
        %v2070 = vpow.pop %v2069
        %v2071 = vadd.f32 %v1944, %v1946
        %2072 = vadd.xlane.f32.xlu0 %v2071
        %v2073 = vpop.xlane.xlu0 %2072
        %v2074 = vadd.f32 %v1948, %v1950
        %2075 = vadd.xlane.f32.xlu0 %v2074
        %v2076 = vpop.xlane.xlu0 %2075
        %v2077 = vadd.f32 %v1952, %v1954
        %2078 = vadd.xlane.f32.xlu0 %v2077
        %v2079 = vpop.xlane.xlu0 %2078
        %v2080 = vadd.f32 %v1956, %v1958
        %2081 = vadd.xlane.f32.xlu0 %v2080
        %v2082 = vpop.xlane.xlu0 %2081
        %v2083 = vadd.f32 %v1960, %v1962
        %2084 = vadd.xlane.f32.xlu0 %v2083
        %v2085 = vpop.xlane.xlu0 %2084
        %v2086 = vadd.f32 %v1964, %v1966
        %2087 = vadd.xlane.f32.xlu0 %v2086
        %v2088 = vpop.xlane.xlu0 %2087
        %v2089 = vadd.f32 %v1968, %v1970
        %2090 = vadd.xlane.f32.xlu0 %v2089
        %v2091 = vpop.xlane.xlu0 %2090
        %v2092 = vadd.f32 %v1972, %v1974
        %2093 = vadd.xlane.f32.xlu0 %v2092
        %v2094 = vpop.xlane.xlu0 %2093
        %v2095 = vadd.f32 %v1976, %v1978
        %2096 = vadd.xlane.f32.xlu0 %v2095
        %v2097 = vpop.xlane.xlu0 %2096
        %v2098 = vadd.f32 %v1980, %v1982
        %2099 = vadd.xlane.f32.xlu0 %v2098
        %v2100 = vpop.xlane.xlu0 %2099
        %v2101 = vadd.f32 %v1984, %v1986
        %2102 = vadd.xlane.f32.xlu0 %v2101
        %v2103 = vpop.xlane.xlu0 %2102
        %v2104 = vadd.f32 %v1988, %v1990
        %2105 = vadd.xlane.f32.xlu0 %v2104
        %v2106 = vpop.xlane.xlu0 %2105
        %v2107 = vadd.f32 %v1992, %v1994
        %2108 = vadd.xlane.f32.xlu0 %v2107
        %v2109 = vpop.xlane.xlu0 %2108
        %v2110 = vadd.f32 %v1996, %v1998
        %2111 = vadd.xlane.f32.xlu0 %v2110
        %v2112 = vpop.xlane.xlu0 %2111
        %v2113 = vadd.f32 %v2000, %v2002
        %2114 = vadd.xlane.f32.xlu0 %v2113
        %v2115 = vpop.xlane.xlu0 %2114
        %v2116 = vadd.f32 %v2004, %v2006
        %2117 = vadd.xlane.f32.xlu0 %v2116
        %v2118 = vpop.xlane.xlu0 %2117
        %v2119 = vadd.f32 %v2008, %v2010
        %2120 = vadd.xlane.f32.xlu0 %v2119
        %v2121 = vpop.xlane.xlu0 %2120
        %v2122 = vadd.f32 %v2012, %v2014
        %2123 = vadd.xlane.f32.xlu0 %v2122
        %v2124 = vpop.xlane.xlu0 %2123
        %v2125 = vadd.f32 %v2016, %v2018
        %2126 = vadd.xlane.f32.xlu0 %v2125
        %v2127 = vpop.xlane.xlu0 %2126
        %v2128 = vadd.f32 %v2020, %v2022
        %2129 = vadd.xlane.f32.xlu0 %v2128
        %v2130 = vpop.xlane.xlu0 %2129
        %v2131 = vadd.f32 %v2024, %v2026
        %2132 = vadd.xlane.f32.xlu0 %v2131
        %v2133 = vpop.xlane.xlu0 %2132
        %v2134 = vadd.f32 %v2028, %v2030
        %2135 = vadd.xlane.f32.xlu0 %v2134
        %v2136 = vpop.xlane.xlu0 %2135
        %v2137 = vadd.f32 %v2032, %v2034
        %2138 = vadd.xlane.f32.xlu0 %v2137
        %v2139 = vpop.xlane.xlu0 %2138
        %v2140 = vadd.f32 %v2036, %v2038
        %2141 = vadd.xlane.f32.xlu0 %v2140
        %v2142 = vpop.xlane.xlu0 %2141
        %v2143 = vadd.f32 %v2040, %v2042
        %2144 = vadd.xlane.f32.xlu0 %v2143
        %v2145 = vpop.xlane.xlu0 %2144
        %v2146 = vadd.f32 %v2044, %v2046
        %2147 = vadd.xlane.f32.xlu0 %v2146
        %v2148 = vpop.xlane.xlu0 %2147
        %v2149 = vadd.f32 %v2048, %v2050
        %2150 = vadd.xlane.f32.xlu0 %v2149
        %v2151 = vpop.xlane.xlu0 %2150
        %v2152 = vadd.f32 %v2052, %v2054
        %2153 = vadd.xlane.f32.xlu0 %v2152
        %v2154 = vpop.xlane.xlu0 %2153
        %v2155 = vadd.f32 %v2056, %v2058
        %2156 = vadd.xlane.f32.xlu0 %v2155
        %v2157 = vpop.xlane.xlu0 %2156
        %v2158 = vadd.f32 %v2060, %v2062
        %2159 = vadd.xlane.f32.xlu0 %v2158
        %v2160 = vpop.xlane.xlu0 %2159
        %v2161 = vadd.f32 %v2064, %v2066
        %2162 = vadd.xlane.f32.xlu0 %v2161
        %v2163 = vpop.xlane.xlu0 %2162
        %v2164 = vadd.f32 %v2068, %v2070
        %2165 = vadd.xlane.f32.xlu0 %v2164
        %v2166 = vpop.xlane.xlu0 %2165
        %v2167 = vrcp.pop %v2073
        %v2168 = vrcp.pop %v2076
        %v2169 = vrcp.pop %v2079
        %v2170 = vrcp.pop %v2082
        %v2171 = vrcp.pop %v2085
        %v2172 = vrcp.pop %v2088
        %v2173 = vrcp.pop %v2091
        %v2174 = vrcp.pop %v2094
        %v2175 = vrcp.pop %v2097
        %v2176 = vrcp.pop %v2100
        %v2177 = vrcp.pop %v2103
        %v2178 = vrcp.pop %v2106
        %v2179 = vrcp.pop %v2109
        %v2180 = vrcp.pop %v2112
        %v2181 = vrcp.pop %v2115
        %v2182 = vrcp.pop %v2118
        %v2183 = vrcp.pop %v2121
        %v2184 = vrcp.pop %v2124
        %v2185 = vrcp.pop %v2127
        %v2186 = vrcp.pop %v2130
        %v2187 = vrcp.pop %v2133
        %v2188 = vrcp.pop %v2136
        %v2189 = vrcp.pop %v2139
        %v2190 = vrcp.pop %v2142
        %v2191 = vrcp.pop %v2145
        %v2192 = vrcp.pop %v2148
        %v2193 = vrcp.pop %v2151
        %v2194 = vrcp.pop %v2154
        %v2195 = vrcp.pop %v2157
        %v2196 = vrcp.pop %v2160
        %v2197 = vrcp.pop %v2163
        %v2198 = vrcp.pop %v2166
        %v2199 = vmul.f32 %v1944, %v2167
        %v2200 = vmul.f32 %v1946, %v2167
        %v2201 = vmul.f32 %v1948, %v2168
        %v2202 = vmul.f32 %v1950, %v2168
        %v2203 = vmul.f32 %v1952, %v2169
        %v2204 = vmul.f32 %v1954, %v2169
        %v2205 = vmul.f32 %v1956, %v2170
        %v2206 = vmul.f32 %v1958, %v2170
        %v2207 = vmul.f32 %v1960, %v2171
        %v2208 = vmul.f32 %v1962, %v2171
        %v2209 = vmul.f32 %v1964, %v2172
        %v2210 = vmul.f32 %v1966, %v2172
        %v2211 = vmul.f32 %v1968, %v2173
        %v2212 = vmul.f32 %v1970, %v2173
        %v2213 = vmul.f32 %v1972, %v2174
        %v2214 = vmul.f32 %v1974, %v2174
        %v2215 = vmul.f32 %v1976, %v2175
        %v2216 = vmul.f32 %v1978, %v2175
        %v2217 = vmul.f32 %v1980, %v2176
        %v2218 = vmul.f32 %v1982, %v2176
        %v2219 = vmul.f32 %v1984, %v2177
        %v2220 = vmul.f32 %v1986, %v2177
        %v2221 = vmul.f32 %v1988, %v2178
        %v2222 = vmul.f32 %v1990, %v2178
        %v2223 = vmul.f32 %v1992, %v2179
        %v2224 = vmul.f32 %v1994, %v2179
        %v2225 = vmul.f32 %v1996, %v2180
        %v2226 = vmul.f32 %v1998, %v2180
        %v2227 = vmul.f32 %v2000, %v2181
        %v2228 = vmul.f32 %v2002, %v2181
        %v2229 = vmul.f32 %v2004, %v2182
        %v2230 = vmul.f32 %v2006, %v2182
        %v2231 = vmul.f32 %v2008, %v2183
        %v2232 = vmul.f32 %v2010, %v2183
        %v2233 = vmul.f32 %v2012, %v2184
        %v2234 = vmul.f32 %v2014, %v2184
        %v2235 = vmul.f32 %v2016, %v2185
        %v2236 = vmul.f32 %v2018, %v2185
        %v2237 = vmul.f32 %v2020, %v2186
        %v2238 = vmul.f32 %v2022, %v2186
        %v2239 = vmul.f32 %v2024, %v2187
        %v2240 = vmul.f32 %v2026, %v2187
        %v2241 = vmul.f32 %v2028, %v2188
        %v2242 = vmul.f32 %v2030, %v2188
        %v2243 = vmul.f32 %v2032, %v2189
        %v2244 = vmul.f32 %v2034, %v2189
        %v2245 = vmul.f32 %v2036, %v2190
        %v2246 = vmul.f32 %v2038, %v2190
        %v2247 = vmul.f32 %v2040, %v2191
        %v2248 = vmul.f32 %v2042, %v2191
        %v2249 = vmul.f32 %v2044, %v2192
        %v2250 = vmul.f32 %v2046, %v2192
        %v2251 = vmul.f32 %v2048, %v2193
        %v2252 = vmul.f32 %v2050, %v2193
        %v2253 = vmul.f32 %v2052, %v2194
        %v2254 = vmul.f32 %v2054, %v2194
        %v2255 = vmul.f32 %v2056, %v2195
        %v2256 = vmul.f32 %v2058, %v2195
        %v2257 = vmul.f32 %v2060, %v2196
        %v2258 = vmul.f32 %v2062, %v2196
        %v2259 = vmul.f32 %v2064, %v2197
        %v2260 = vmul.f32 %v2066, %v2197
        %v2261 = vmul.f32 %v2068, %v2198
        %v2262 = vmul.f32 %v2070, %v2198
        %v2263 = vpack.c.bf16 %v2201, %v2199
        %v2264 = vpack.c.bf16 %v2202, %v2200
        %v2265 = vpack.c.bf16 %v2205, %v2203
        %v2266 = vpack.c.bf16 %v2206, %v2204
        %v2267 = vpack.c.bf16 %v2209, %v2207
        %v2268 = vpack.c.bf16 %v2210, %v2208
        %v2269 = vpack.c.bf16 %v2213, %v2211
        %v2270 = vpack.c.bf16 %v2214, %v2212
        %v2271 = vpack.c.bf16 %v2217, %v2215
        %v2272 = vpack.c.bf16 %v2218, %v2216
        %v2273 = vpack.c.bf16 %v2221, %v2219
        %v2274 = vpack.c.bf16 %v2222, %v2220
        %v2275 = vpack.c.bf16 %v2225, %v2223
        %v2276 = vpack.c.bf16 %v2226, %v2224
        %v2277 = vpack.c.bf16 %v2229, %v2227
        %v2278 = vpack.c.bf16 %v2230, %v2228
        %v2279 = vpack.c.bf16 %v2233, %v2231
        %v2280 = vpack.c.bf16 %v2234, %v2232
        %v2281 = vpack.c.bf16 %v2237, %v2235
        %v2282 = vpack.c.bf16 %v2238, %v2236
        %v2283 = vpack.c.bf16 %v2241, %v2239
        %v2284 = vpack.c.bf16 %v2242, %v2240
        %v2285 = vpack.c.bf16 %v2245, %v2243
        %v2286 = vpack.c.bf16 %v2246, %v2244
        %v2287 = vpack.c.bf16 %v2249, %v2247
        %v2288 = vpack.c.bf16 %v2250, %v2248
        %v2289 = vpack.c.bf16 %v2253, %v2251
        %v2290 = vpack.c.bf16 %v2254, %v2252
        %v2291 = vpack.c.bf16 %v2257, %v2255
        %v2292 = vpack.c.bf16 %v2258, %v2256
        %v2293 = vpack.c.bf16 %v2261, %v2259
        %v2294 = vpack.c.bf16 %v2262, %v2260
        %v2297 = vrot.slane %v602, 2
        %v2298 = vrot.slane %v603, 2
        %v2300 = vsel %vm718, %v1270, 0
        %v2303 = vsel %vm767, %v2297, 0
        %v2306 = vsel %vm767, %v2298, 0
        %2308 = vmatprep.subr.bf16.mxu0 %v2306
        %2309 = vmatpush1.bf16.msra.mxu0 %v2303
        %2310 = vmatprep.subr.bf16.mxu0 0
        %2311 = vmatpush1.bf16.msra.mxu0 0
        %2312 = vmatprep.subr.bf16.mxu0 0
        %2313 = vmatpush1.bf16.msra.mxu0 0
        %2314 = vmatprep.subr.bf16.mxu0 0
        %2315 = vmatpush1.bf16.msra.mxu0 0
        %2316 = vmatprep.subr.bf16.mxu0 0
        %2317 = vmatpush1.bf16.msra.mxu0 0
        %2318 = vmatprep.subr.bf16.mxu0 0
        %2319 = vmatpush1.bf16.msra.mxu0 0
        %2320 = vmatprep.subr.bf16.mxu0 0
        %2321 = vmatpush1.bf16.msra.mxu0 0
        %2322 = vmatprep.subr.bf16.mxu0 0
        %2323 = vmatpush1.bf16.msra.mxu0 0
        %2324 = vmatprep.subr.bf16.mxu0 0
        %2325 = vmatpush1.bf16.msra.mxu0 0
        %2326 = vmatprep.subr.bf16.mxu0 0
        %2327 = vmatpush1.bf16.msra.mxu0 0
        %2328 = vmatprep.subr.bf16.mxu0 0
        %2329 = vmatpush1.bf16.msra.mxu0 0
        %2330 = vmatprep.subr.bf16.mxu0 0
        %2331 = vmatpush1.bf16.msra.mxu0 0
        %2332 = vmatprep.subr.bf16.mxu0 0
        %2333 = vmatpush1.bf16.msra.mxu0 0
        %2334 = vmatprep.subr.bf16.mxu0 0
        %2335 = vmatpush1.bf16.msra.mxu0 0
        %2336 = vmatprep.subr.bf16.mxu0 0
        %2337 = vmatpush1.bf16.msra.mxu0 0
        %2338 = vmatprep.subr.bf16.mxu0 0
        %2339 = vmatpush1.bf16.msra.mxu0 0
        %2340 = vmatprep.mubr.bf16.mxu0 0
        %2341 = vmatmul.mubr.bf16.gmra.mrb[0].mxu0 %v2300
        %v2342 = vpop.f32.mrb[0].mxu0
        %v2343 = vadd.f32 0.0, %v2342
        %v2344 = vpop.f32.mrb[0].mxu0
        %v2345 = vadd.f32 0.0, %v2344
        %v2346 = vpop.f32.mrb[0].mxu0
        %v2347 = vpop.f32.mrb[0].mxu0
        %2348 = vdwg.mxu0
        %v2349 = vpack.c.bf16 %v2343, %v2343
        %v2350 = vpack.c.bf16 %v2345, %v2345
        %2351 = vmatprep.subr.bf16.mxu0 %v1752
        %2352 = vmatpush1.bf16.xpose.msra.mxu0 %v1751
        %2353 = vmatprep.subr.bf16.mxu0 %v1754
        %2354 = vmatpush1.bf16.xpose.msra.mxu0 %v1753
        %2355 = vmatprep.subr.bf16.mxu0 %v1756
        %2356 = vmatpush1.bf16.xpose.msra.mxu0 %v1755
        %2357 = vmatprep.subr.bf16.mxu0 %v1758
        %2358 = vmatpush1.bf16.xpose.msra.mxu0 %v1757
        %2359 = vmatprep.subr.bf16.mxu0 %v1760
        %2360 = vmatpush1.bf16.xpose.msra.mxu0 %v1759
        %2361 = vmatprep.subr.bf16.mxu0 %v1762
        %2362 = vmatpush1.bf16.xpose.msra.mxu0 %v1761
        %2363 = vmatprep.subr.bf16.mxu0 %v1764
        %2364 = vmatpush1.bf16.xpose.msra.mxu0 %v1763
        %2365 = vmatprep.subr.bf16.mxu0 %v1766
        %2366 = vmatpush1.bf16.xpose.msra.mxu0 %v1765
        %2367 = vmatprep.subr.bf16.mxu0 %v1768
        %2368 = vmatpush1.bf16.xpose.msra.mxu0 %v1767
        %2369 = vmatprep.subr.bf16.mxu0 %v1770
        %2370 = vmatpush1.bf16.xpose.msra.mxu0 %v1769
        %2371 = vmatprep.subr.bf16.mxu0 %v1772
        %2372 = vmatpush1.bf16.xpose.msra.mxu0 %v1771
        %2373 = vmatprep.subr.bf16.mxu0 %v1774
        %2374 = vmatpush1.bf16.xpose.msra.mxu0 %v1773
        %2375 = vmatprep.subr.bf16.mxu0 %v1776
        %2376 = vmatpush1.bf16.xpose.msra.mxu0 %v1775
        %2377 = vmatprep.subr.bf16.mxu0 %v1778
        %2378 = vmatpush1.bf16.xpose.msra.mxu0 %v1777
        %2379 = vmatprep.subr.bf16.mxu0 %v1780
        %2380 = vmatpush1.bf16.xpose.msra.mxu0 %v1779
        %2381 = vmatprep.subr.bf16.mxu0 %v1782
        %2382 = vmatpush1.bf16.xpose.msra.mxu0 %v1781
        %2383 = vmatprep.mubr.bf16.mxu0 %v2350
        %2384 = vmatmul.mubr.bf16.gmra.mrb[0].mxu0 %v2349
        %v2385 = vpop.f32.mrb[0].mxu0
        %v2386 = vadd.f32 0.0, %v2385
        %v2387 = vpop.f32.mrb[0].mxu0
        %v2388 = vadd.f32 0.0, %v2387
        %v2389 = vpop.f32.mrb[0].mxu0
        %v2390 = vpop.f32.mrb[0].mxu0
        %2391 = vdwg.mxu0
        %v2394 = vrot.slane %v604, 2
        %v2395 = vrot.slane %v605, 2
        %v2397 = vsel %vm718, %v1258, 0
        %v2400 = vsel %vm767, %v2394, 0
        %v2403 = vsel %vm767, %v2395, 0
        %2405 = vmatprep.subr.bf16.mxu0 %v2403
        %2406 = vmatpush1.bf16.msra.mxu0 %v2400
        %2407 = vmatprep.subr.bf16.mxu0 0
        %2408 = vmatpush1.bf16.msra.mxu0 0
        %2409 = vmatprep.subr.bf16.mxu0 0
        %2410 = vmatpush1.bf16.msra.mxu0 0
        %2411 = vmatprep.subr.bf16.mxu0 0
        %2412 = vmatpush1.bf16.msra.mxu0 0
        %2413 = vmatprep.subr.bf16.mxu0 0
        %2414 = vmatpush1.bf16.msra.mxu0 0
        %2415 = vmatprep.subr.bf16.mxu0 0
        %2416 = vmatpush1.bf16.msra.mxu0 0
        %2417 = vmatprep.subr.bf16.mxu0 0
        %2418 = vmatpush1.bf16.msra.mxu0 0
        %2419 = vmatprep.subr.bf16.mxu0 0
        %2420 = vmatpush1.bf16.msra.mxu0 0
        %2421 = vmatprep.subr.bf16.mxu0 0
        %2422 = vmatpush1.bf16.msra.mxu0 0
        %2423 = vmatprep.subr.bf16.mxu0 0
        %2424 = vmatpush1.bf16.msra.mxu0 0
        %2425 = vmatprep.subr.bf16.mxu0 0
        %2426 = vmatpush1.bf16.msra.mxu0 0
        %2427 = vmatprep.subr.bf16.mxu0 0
        %2428 = vmatpush1.bf16.msra.mxu0 0
        %2429 = vmatprep.subr.bf16.mxu0 0
        %2430 = vmatpush1.bf16.msra.mxu0 0
        %2431 = vmatprep.subr.bf16.mxu0 0
        %2432 = vmatpush1.bf16.msra.mxu0 0
        %2433 = vmatprep.subr.bf16.mxu0 0
        %2434 = vmatpush1.bf16.msra.mxu0 0
        %2435 = vmatprep.subr.bf16.mxu0 0
        %2436 = vmatpush1.bf16.msra.mxu0 0
        %2437 = vmatprep.mubr.bf16.mxu0 0
        %2438 = vmatmul.mubr.bf16.gmra.mrb[0].mxu0 %v2397
        %v2439 = vpop.f32.mrb[0].mxu0
        %v2440 = vadd.f32 0.0, %v2439
        %v2441 = vpop.f32.mrb[0].mxu0
        %v2442 = vadd.f32 0.0, %v2441
        %v2443 = vpop.f32.mrb[0].mxu0
        %v2444 = vpop.f32.mrb[0].mxu0
        %2445 = vdwg.mxu0
        %v2446 = vpack.c.bf16 %v2440, %v2440
        %v2447 = vpack.c.bf16 %v2442, %v2442
        %2448 = vmatprep.subr.bf16.mxu0 %v2264
        %2449 = vmatpush1.bf16.xpose.msra.mxu0 %v2263
        %2450 = vmatprep.subr.bf16.mxu0 %v2266
        %2451 = vmatpush1.bf16.xpose.msra.mxu0 %v2265
        %2452 = vmatprep.subr.bf16.mxu0 %v2268
        %2453 = vmatpush1.bf16.xpose.msra.mxu0 %v2267
        %2454 = vmatprep.subr.bf16.mxu0 %v2270
        %2455 = vmatpush1.bf16.xpose.msra.mxu0 %v2269
        %2456 = vmatprep.subr.bf16.mxu0 %v2272
        %2457 = vmatpush1.bf16.xpose.msra.mxu0 %v2271
        %2458 = vmatprep.subr.bf16.mxu0 %v2274
        %2459 = vmatpush1.bf16.xpose.msra.mxu0 %v2273
        %2460 = vmatprep.subr.bf16.mxu0 %v2276
        %2461 = vmatpush1.bf16.xpose.msra.mxu0 %v2275
        %2462 = vmatprep.subr.bf16.mxu0 %v2278
        %2463 = vmatpush1.bf16.xpose.msra.mxu0 %v2277
        %2464 = vmatprep.subr.bf16.mxu0 %v2280
        %2465 = vmatpush1.bf16.xpose.msra.mxu0 %v2279
        %2466 = vmatprep.subr.bf16.mxu0 %v2282
        %2467 = vmatpush1.bf16.xpose.msra.mxu0 %v2281
        %2468 = vmatprep.subr.bf16.mxu0 %v2284
        %2469 = vmatpush1.bf16.xpose.msra.mxu0 %v2283
        %2470 = vmatprep.subr.bf16.mxu0 %v2286
        %2471 = vmatpush1.bf16.xpose.msra.mxu0 %v2285
        %2472 = vmatprep.subr.bf16.mxu0 %v2288
        %2473 = vmatpush1.bf16.xpose.msra.mxu0 %v2287
        %2474 = vmatprep.subr.bf16.mxu0 %v2290
        %2475 = vmatpush1.bf16.xpose.msra.mxu0 %v2289
        %2476 = vmatprep.subr.bf16.mxu0 %v2292
        %2477 = vmatpush1.bf16.xpose.msra.mxu0 %v2291
        %2478 = vmatprep.subr.bf16.mxu0 %v2294
        %2479 = vmatpush1.bf16.xpose.msra.mxu0 %v2293
        %2480 = vmatprep.mubr.bf16.mxu0 %v2447
        %2481 = vmatmul.mubr.bf16.gmra.mrb[0].mxu0 %v2446
        %v2482 = vpop.f32.mrb[0].mxu0
        %v2483 = vadd.f32 0.0, %v2482
        %v2484 = vpop.f32.mrb[0].mxu0
        %v2485 = vadd.f32 0.0, %v2484
        %v2486 = vpop.f32.mrb[0].mxu0
        %v2487 = vpop.f32.mrb[0].mxu0
        %2488 = vdwg.mxu0
        %v2489 = vld [vmem:[%s6] sm:$0xff]
        %v2490 = vld [vmem:[%s7] sm:$0xff]
        %2492 = vset.pattern.permute.xlu0 0
        %2493 = vperm.xlu0 %2492, %v2490
        %v2494 = vpop.permute.xlu0 %2493
        %v2497 = vsel %vm718, %v2489, 0
        %vm2499 = vcmask 1043456
        %v2501 = vsel %vm2499, %v2386, 0
        %v2504 = vsel %vm2499, %v2388, 0
        %2506 = vmatprep.subr.mxu0 %v2504
        %2507 = vmatpush1.msra.mxu0 %v2501
        %2508 = vmatprep.subr.mxu0 0.0
        %2509 = vmatpush1.msra.mxu0 0.0
        %2510 = vmatprep.subr.mxu0 0.0
        %2511 = vmatpush1.msra.mxu0 0.0
        %2512 = vmatprep.subr.mxu0 0.0
        %2513 = vmatpush1.msra.mxu0 0.0
        %2514 = vmatprep.subr.mxu0 0.0
        %2515 = vmatpush1.msra.mxu0 0.0
        %2516 = vmatprep.subr.mxu0 0.0
        %2517 = vmatpush1.msra.mxu0 0.0
        %2518 = vmatprep.subr.mxu0 0.0
        %2519 = vmatpush1.msra.mxu0 0.0
        %2520 = vmatprep.subr.mxu0 0.0
        %2521 = vmatpush1.msra.mxu0 0.0
        %2522 = vmatprep.subr.mxu0 0.0
        %2523 = vmatpush1.msra.mxu0 0.0
        %2524 = vmatprep.subr.mxu0 0.0
        %2525 = vmatpush1.msra.mxu0 0.0
        %2526 = vmatprep.subr.mxu0 0.0
        %2527 = vmatpush1.msra.mxu0 0.0
        %2528 = vmatprep.subr.mxu0 0.0
        %2529 = vmatpush1.msra.mxu0 0.0
        %2530 = vmatprep.subr.mxu0 0.0
        %2531 = vmatpush1.msra.mxu0 0.0
        %2532 = vmatprep.subr.mxu0 0.0
        %2533 = vmatpush1.msra.mxu0 0.0
        %2534 = vmatprep.subr.mxu0 0.0
        %2535 = vmatpush1.msra.mxu0 0.0
        %2536 = vmatprep.subr.mxu0 0.0
        %2537 = vmatpush1.msra.mxu0 0.0
        %2538 = vmatprep.subr.mxu0 0.0
        %2539 = vmatpush1.msra.mxu0 0.0
        %2540 = vmatprep.subr.mxu0 0.0
        %2541 = vmatpush1.msra.mxu0 0.0
        %2542 = vmatprep.subr.mxu0 0.0
        %2543 = vmatpush1.msra.mxu0 0.0
        %2544 = vmatprep.subr.mxu0 0.0
        %2545 = vmatpush1.msra.mxu0 0.0
        %2546 = vmatprep.subr.mxu0 0.0
        %2547 = vmatpush1.msra.mxu0 0.0
        %2548 = vmatprep.subr.mxu0 0.0
        %2549 = vmatpush1.msra.mxu0 0.0
        %2550 = vmatprep.subr.mxu0 0.0
        %2551 = vmatpush1.msra.mxu0 0.0
        %2552 = vmatprep.subr.mxu0 0.0
        %2553 = vmatpush1.msra.mxu0 0.0
        %2554 = vmatprep.subr.mxu0 0.0
        %2555 = vmatpush1.msra.mxu0 0.0
        %2556 = vmatprep.subr.mxu0 0.0
        %2557 = vmatpush1.msra.mxu0 0.0
        %2558 = vmatprep.subr.mxu0 0.0
        %2559 = vmatpush1.msra.mxu0 0.0
        %2560 = vmatprep.subr.mxu0 0.0
        %2561 = vmatpush1.msra.mxu0 0.0
        %2562 = vmatprep.subr.mxu0 0.0
        %2563 = vmatpush1.msra.mxu0 0.0
        %2564 = vmatprep.subr.mxu0 0.0
        %2565 = vmatpush1.msra.mxu0 0.0
        %2566 = vmatprep.subr.mxu0 0.0
        %2567 = vmatpush1.msra.mxu0 0.0
        %2568 = vmatprep.subr.mxu0 0.0
        %2569 = vmatpush1.msra.mxu0 0.0
        %2570 = vmatprep.mubr.f32.mxu0 0.0
        %2571 = vmatmul.mubr.f32.gmra.mrb[0].mxu0 %v2497
        %v2572 = vpop.f32.mrb[0].mxu0
        %v2573 = vadd.f32 %v2494, %v2572
        %v2574 = vpop.f32.mrb[0].mxu0
        %v2575 = vadd.f32 %v2494, %v2574
        %2576 = vdwg.mxu0
        %v2577 = vld [vmem:[%s8] sm:$0xff]
        %v2578 = vld [vmem:[%s9] sm:$0xff]
        %2580 = vset.pattern.permute.xlu0 0
        %2581 = vperm.xlu0 %2580, %v2578
        %v2582 = vpop.permute.xlu0 %2581
        %v2585 = vsel %vm718, %v2577, 0
        %v2588 = vsel %vm2499, %v2483, 0
        %v2591 = vsel %vm2499, %v2485, 0
        %2593 = vmatprep.subr.mxu0 %v2591
        %2594 = vmatpush1.msra.mxu0 %v2588
        %2595 = vmatprep.subr.mxu0 0.0
        %2596 = vmatpush1.msra.mxu0 0.0
        %2597 = vmatprep.subr.mxu0 0.0
        %2598 = vmatpush1.msra.mxu0 0.0
        %2599 = vmatprep.subr.mxu0 0.0
        %2600 = vmatpush1.msra.mxu0 0.0
        %2601 = vmatprep.subr.mxu0 0.0
        %2602 = vmatpush1.msra.mxu0 0.0
        %2603 = vmatprep.subr.mxu0 0.0
        %2604 = vmatpush1.msra.mxu0 0.0
        %2605 = vmatprep.subr.mxu0 0.0
        %2606 = vmatpush1.msra.mxu0 0.0
        %2607 = vmatprep.subr.mxu0 0.0
        %2608 = vmatpush1.msra.mxu0 0.0
        %2609 = vmatprep.subr.mxu0 0.0
        %2610 = vmatpush1.msra.mxu0 0.0
        %2611 = vmatprep.subr.mxu0 0.0
        %2612 = vmatpush1.msra.mxu0 0.0
        %2613 = vmatprep.subr.mxu0 0.0
        %2614 = vmatpush1.msra.mxu0 0.0
        %2615 = vmatprep.subr.mxu0 0.0
        %2616 = vmatpush1.msra.mxu0 0.0
        %2617 = vmatprep.subr.mxu0 0.0
        %2618 = vmatpush1.msra.mxu0 0.0
        %2619 = vmatprep.subr.mxu0 0.0
        %2620 = vmatpush1.msra.mxu0 0.0
        %2621 = vmatprep.subr.mxu0 0.0
        %2622 = vmatpush1.msra.mxu0 0.0
        %2623 = vmatprep.subr.mxu0 0.0
        %2624 = vmatpush1.msra.mxu0 0.0
        %2625 = vmatprep.subr.mxu0 0.0
        %2626 = vmatpush1.msra.mxu0 0.0
        %2627 = vmatprep.subr.mxu0 0.0
        %2628 = vmatpush1.msra.mxu0 0.0
        %2629 = vmatprep.subr.mxu0 0.0
        %2630 = vmatpush1.msra.mxu0 0.0
        %2631 = vmatprep.subr.mxu0 0.0
        %2632 = vmatpush1.msra.mxu0 0.0
        %2633 = vmatprep.subr.mxu0 0.0
        %2634 = vmatpush1.msra.mxu0 0.0
        %2635 = vmatprep.subr.mxu0 0.0
        %2636 = vmatpush1.msra.mxu0 0.0
        %2637 = vmatprep.subr.mxu0 0.0
        %2638 = vmatpush1.msra.mxu0 0.0
        %2639 = vmatprep.subr.mxu0 0.0
        %2640 = vmatpush1.msra.mxu0 0.0
        %2641 = vmatprep.subr.mxu0 0.0
        %2642 = vmatpush1.msra.mxu0 0.0
        %2643 = vmatprep.subr.mxu0 0.0
        %2644 = vmatpush1.msra.mxu0 0.0
        %2645 = vmatprep.subr.mxu0 0.0
        %2646 = vmatpush1.msra.mxu0 0.0
        %2647 = vmatprep.subr.mxu0 0.0
        %2648 = vmatpush1.msra.mxu0 0.0
        %2649 = vmatprep.subr.mxu0 0.0
        %2650 = vmatpush1.msra.mxu0 0.0
        %2651 = vmatprep.subr.mxu0 0.0
        %2652 = vmatpush1.msra.mxu0 0.0
        %2653 = vmatprep.subr.mxu0 0.0
        %2654 = vmatpush1.msra.mxu0 0.0
        %2655 = vmatprep.subr.mxu0 0.0
        %2656 = vmatpush1.msra.mxu0 0.0
        %2657 = vmatprep.mubr.f32.mxu0 0.0
        %2658 = vmatmul.mubr.f32.gmra.mrb[0].mxu0 %v2585
        %v2659 = vpop.f32.mrb[0].mxu0
        %v2660 = vadd.f32 %v2582, %v2659
        %v2661 = vpop.f32.mrb[0].mxu0
        %v2662 = vadd.f32 %v2582, %v2661
        %2663 = vdwg.mxu0
        %v2664 = vadd.f32 %v435, %v2573
        %v2665 = vadd.f32 %v436, %v2575
        %2666 = vst [vmem:[%s421] sm:$0xff] %v2664
        %2667 = vst [vmem:[%s421 + $0x8] sm:$0xff] %v2665
        %v2668 = vadd.f32 %v437, %v2660
        %v2669 = vadd.f32 %v438, %v2662
        %2670 = vst [vmem:[%s428] sm:$0xff] %v2668
        %2671 = vst [vmem:[%s428 + $0x8] sm:$0xff] %v2669
        %s2672 = sand.u32 %s260, 1
        %s2673 = scalar_lea.sflag [#allocation4], %s2672
        %s2674 = sand.u32 %s260, 1
        %s2675 = smul.addr %s2674, 16
        %s2676 = scalar_lea.vmem [#allocation5], %s2675
        %s2677 = sand.u32 %s286, 1
        %s2678 = scalar_lea.sflag [#allocation7], %s2677
        %s2679 = sand.u32 %s286, 1
        %s2680 = smul.addr %s2679, 16
        %s2681 = scalar_lea.vmem [#allocation6], %s2680
        // Predicated region
        $region65: #{tpu_custom_call.1} parent=59 // pred_check
          %p2682 = pneg %p270
        $region66: #{tpu_custom_call.1} parent=59 // pred_check_branch
          %2684 = sbr.rel (%p2682) target = $region68
        $region67: #{tpu_custom_call.1} parent=59 // pred_region
          %s2686 = ssub.s32 256, 256
          %2687 = vsyncadd %s2673, %s2686
          %s2688 = smul.addr %s32, 2
          %s2689 = smul.addr %s2688, 128
          %s2690 = scalar_lea.hbm %s10, %s2689
          %s2692 = sshll.u32 %s2676, 4
          %s2693 = int_to_ptr.vmem [resolvable:$true] %s2692
          %2695 = dma.vmem_to_hbm [thread:$0]  %s2693, 256, %s2690, %s2673
        $region68: #{tpu_custom_call.1} parent=59 // pred_fallthru
          _
        // Predicated region
        $region69: #{tpu_custom_call.1} parent=59 // pred_check
          %p2696 = pneg %p296
        $region70: #{tpu_custom_call.1} parent=59 // pred_check_branch
          %2698 = sbr.rel (%p2696) target = $region72
        $region71: #{tpu_custom_call.1} parent=59 // pred_region
          %s2700 = ssub.s32 256, 256
          %2701 = vsyncadd %s2678, %s2700
          %s2702 = smul.addr %s32, 2
          %s2703 = smul.addr %s2702, 128
          %s2704 = scalar_lea.hbm %s11, %s2703
          %s2706 = sshll.u32 %s2681, 4
          %s2707 = int_to_ptr.vmem [resolvable:$true] %s2706
          %2709 = dma.vmem_to_hbm [thread:$0]  %s2707, 256, %s2704, %s2678
        $region72: #{tpu_custom_call.1} parent=59 // pred_fallthru
          _
      $region60: #{tpu_custom_call.1} parent=5 // pred_fallthru
        _
      %p2710 = scmp.le.s32.totalorder 2, %s27
      // Predicated region
      $region73: #{tpu_custom_call.1} parent=5 // pred_check
        %p2711 = pneg %p2710
      $region74: #{tpu_custom_call.1} parent=5 // pred_check_branch
        %2713 = sbr.rel (%p2711) target = $region76
      $region75: #{tpu_custom_call.1} parent=5 // pred_region
        %s2714 = ssub.s32 %s27, 2
        // Predicated region
        $region77: #{tpu_custom_call.1} parent=75 // pred_check
          %p2715 = pneg %p276
        $region78: #{tpu_custom_call.1} parent=75 // pred_check_branch
          %2717 = sbr.rel (%p2715) target = $region80
        $region79: #{tpu_custom_call.1} parent=75 // pred_region
          %s2718 = sand.u32 %s261, 1
          %s2719 = scalar_lea.sflag [#allocation4], %s2718
          %s2720 = sand.u32 %s261, 1
          %s2721 = smul.addr %s2720, 16
          %s2722 = scalar_lea.vmem [#allocation5], %s2721
          %2723 = dma.done %s2719, 256
        $region80: #{tpu_custom_call.1} parent=75 // pred_fallthru
          _
        // Predicated region
        $region81: #{tpu_custom_call.1} parent=75 // pred_check
          %p2724 = pneg %p302
        $region82: #{tpu_custom_call.1} parent=75 // pred_check_branch
          %2726 = sbr.rel (%p2724) target = $region84
        $region83: #{tpu_custom_call.1} parent=75 // pred_region
          %s2727 = sand.u32 %s287, 1
          %s2728 = scalar_lea.sflag [#allocation7], %s2727
          %s2729 = sand.u32 %s287, 1
          %s2730 = smul.addr %s2729, 16
          %s2731 = scalar_lea.vmem [#allocation6], %s2730
          %2732 = dma.done %s2728, 256
        $region84: #{tpu_custom_call.1} parent=75 // pred_fallthru
          _
      $region76: #{tpu_custom_call.1} parent=5 // pred_fallthru
        _
    $region6: #{tpu_custom_call.1} parent=1 // loop_footer
      %s31 = sadd.s32 1, %s27
    $region7: #{tpu_custom_call.1} parent=1 // loop_footer_branch
      %26 = sbr.rel target = $region3
    $region8: #{tpu_custom_call.1} parent=1 // loop_exit
      _
    %2733 = vsyncpa [#allocation3], 1
    %s2734 = scalar_lea.sflag [#allocation3], 1
    %2735 = vsyncpa %s2734, 1
    %2736 = vsyncpa [#allocation4], 1
    %s2737 = scalar_lea.sflag [#allocation4], 1
    %2738 = vsyncpa %s2737, 1
    %2739 = vsyncpa [#allocation7], 1
    %s2740 = scalar_lea.sflag [#allocation7], 1
    %2741 = vsyncpa %s2740, 1

</llo_original>
